<compile_context>
chip_gen: v6e
topology: v6e:2x2x1
jax: 0.10.0
libtpu: 0.0.40
codegen_flags: <defaults>
</compile_context>

<pallas_src>
import functools

import jax
import jax.numpy as jnp
from jax.experimental import pallas as pl
from jax.experimental.pallas import tpu as pltpu


# ---------------------------------------------------------------------------
# Kernel body
# ---------------------------------------------------------------------------
def _jumprelu_sae_kernel(x_ref, w_enc_ref, b_enc_ref, thr_ref, w_dec_ref, b_dec_ref,
                         out_ref, acc_ref, *, nonneg_threshold):
    k = pl.program_id(1)

    @pl.when(k == 0)
    def _():
        acc_ref[...] = jnp.zeros_like(acc_ref)

    # encode (partial, over this d_sae tile): pre = x @ W_enc[:, ks] + b_enc[ks]
    pre = jnp.dot(x_ref[...], w_enc_ref[...],
                  preferred_element_type=jnp.float32) + b_enc_ref[...]

    # JumpReLU gate: mask * relu(pre).  If thresholds are known non-negative
    # (standard JumpReLU), the relu is redundant and can be dropped.
    if nonneg_threshold:
        acts = jnp.where(pre > thr_ref[...], pre, 0.0)
    else:
        acts = jnp.where(pre > thr_ref[...], jnp.maximum(pre, 0.0), 0.0)

    # decode (partial): accumulate acts[ks] @ W_dec[ks, :] into the f32 scratch
    acc_ref[...] += jnp.dot(acts.astype(w_dec_ref.dtype), w_dec_ref[...],
                            preferred_element_type=jnp.float32)

    @pl.when(k == pl.num_programs(1) - 1)
    def _():
        out_ref[...] = (acc_ref[...] + b_dec_ref[...]).astype(out_ref.dtype)


# ---------------------------------------------------------------------------
# VMEM budgeting / tile selection
# ---------------------------------------------------------------------------
def _vmem_capacity_bytes():
    try:
        return int(pltpu.get_tpu_info().vmem_capacity_bytes)
    except Exception:
        return 64 << 20   # conservative fallback (v7x per-TC VMEM)


def _working_set_bytes(tile_m, tile_s, d_model, compute_bytes, out_bytes):
    dbl = 2  # BlockSpec double-buffering
    b = 0
    b += dbl * tile_m * d_model * compute_bytes          # x tile
    b += dbl * d_model * tile_s * compute_bytes          # W_enc tile
    b += dbl * tile_s * d_model * compute_bytes          # W_dec tile
    b += dbl * 2 * tile_s * 4                            # b_enc + threshold tiles (f32)
    b += dbl * d_model * 4                               # b_dec (f32)
    b += dbl * tile_m * d_model * out_bytes              # output tile
    b += tile_m * d_model * 4                            # f32 accumulator scratch
    return b


def _select_tiles(N, d_model, d_sae, compute_bytes, out_bytes, budget):
    """Largest tile_m that fits (amortizes weight re-streaming), then largest tile_s."""
    m_cands = [t for t in (1024, 768, 512, 384, 256, 192, 128, 64, 32, 16, 8)
               if t <= N and N % t == 0]
    if not m_cands:
        m_cands = [N]
    s_cands = [t for t in (2048, 1024, 512, 256, 128)
               if t <= d_sae and d_sae % t == 0]
    if not s_cands:
        s_cands = [d_sae]

    for tm in m_cands:                      # prefer big row tiles (roofline crossover)
        for ts in s_cands:                  # then the biggest d_sae tile that fits
            if _working_set_bytes(tm, ts, d_model, compute_bytes, out_bytes) <= budget:
                return tm, ts
    return m_cands[-1], s_cands[-1]         # smallest legal combo as last resort


# ---------------------------------------------------------------------------
# Fused forward
# ---------------------------------------------------------------------------
@functools.partial(jax.jit, static_argnames=("tile_m", "tile_s", "compute_dtype",
                                             "out_dtype", "nonneg_threshold"))
def jumprelu_sae_forward(x, W_enc, W_dec, threshold, b_enc, b_dec,
                         *, tile_m=None, tile_s=None,
                         compute_dtype=jnp.bfloat16, out_dtype=None,
                         nonneg_threshold=False):
    """Fused JumpReLUSAE.forward: recon = decode(encode(x)).

    Pass W_enc/W_dec (and x) already in `compute_dtype` to avoid per-call casts.
    tile_m/tile_s=None -> auto-selected against the device VMEM capacity.
    """
    N, d_model = x.shape
    d_sae = W_enc.shape[1]
    assert W_enc.shape == (d_model, d_sae)
    assert W_dec.shape == (d_sae, d_model)
    assert d_model % 128 == 0, "d_model must be a multiple of 128 (lane-dense tiles)"

    out_dtype = x.dtype if out_dtype is None else out_dtype
    compute_bytes = jnp.dtype(compute_dtype).itemsize
    out_bytes = jnp.dtype(out_dtype).itemsize

    vmem_cap = _vmem_capacity_bytes()
    budget = int(vmem_cap * 0.70)           # leave headroom for compiler scratch

    auto_m, auto_s = _select_tiles(N, d_model, d_sae, compute_bytes, out_bytes, budget)
    tile_m = auto_m if tile_m is None else min(tile_m, N)
    tile_s = auto_s if tile_s is None else min(tile_s, d_sae)

    # TODO(synk): no padding path for ragged N / d_sae; callers must pad to the tile grid.
    assert N % tile_m == 0, "N must be a multiple of tile_m"
    assert d_sae % tile_s == 0, "d_sae must be a multiple of tile_s"
    assert tile_m % 8 == 0, "tile_m must be a multiple of 8 (16 preferred for bf16)"
    assert tile_s % 128 == 0, "tile_s must be a multiple of 128 (256 preferred for MXU)"

    # Casts are no-ops when inputs already arrive in compute_dtype (pre-cast weights!).
    x_lo = x if x.dtype == compute_dtype else x.astype(compute_dtype)
    w_enc_lo = W_enc if W_enc.dtype == compute_dtype else W_enc.astype(compute_dtype)
    w_dec_lo = W_dec if W_dec.dtype == compute_dtype else W_dec.astype(compute_dtype)
    b_enc2 = b_enc.astype(jnp.float32).reshape(1, d_sae)
    thr2 = threshold.astype(jnp.float32).reshape(1, d_sae)
    b_dec2 = b_dec.astype(jnp.float32).reshape(1, d_model)

    ws = _working_set_bytes(tile_m, tile_s, d_model, compute_bytes, out_bytes)
    # v7x-safe clamp: never request more than ~85% of the physical VMEM capacity.
    vmem_limit = min(int(vmem_cap * 0.85),
                     max(32 << 20, int(ws * 1.4) + (4 << 20)))

    n_row_tiles = N // tile_m
    cost = pl.CostEstimate(
        flops=4 * N * d_model * d_sae,
        transcendentals=0,
        bytes_accessed=(x_lo.size * compute_bytes
                        # W_enc / W_dec are re-streamed once per row tile
                        + n_row_tiles * (w_enc_lo.size + w_dec_lo.size) * compute_bytes
                        + n_row_tiles * (b_enc2.size + thr2.size) * 4
                        + b_dec2.size * 4
                        + N * d_model * out_bytes),
    )

    grid = (n_row_tiles, d_sae // tile_s)
    kernel = functools.partial(_jumprelu_sae_kernel, nonneg_threshold=nonneg_threshold)

    return pl.pallas_call(
        kernel,
        out_shape=jax.ShapeDtypeStruct((N, d_model), out_dtype),
        grid_spec=pltpu.PrefetchScalarGridSpec(
            num_scalar_prefetch=0,
            grid=grid,
            in_specs=[
                pl.BlockSpec((tile_m, d_model), lambda i, k: (i, 0)),   # x rows (resident over k)
                pl.BlockSpec((d_model, tile_s), lambda i, k: (0, k)),   # W_enc d_sae tile
                pl.BlockSpec((1, tile_s), lambda i, k: (0, k)),         # b_enc tile
                pl.BlockSpec((1, tile_s), lambda i, k: (0, k)),         # threshold tile
                pl.BlockSpec((tile_s, d_model), lambda i, k: (k, 0)),   # W_dec d_sae tile
                pl.BlockSpec((1, d_model), lambda i, k: (0, 0)),        # b_dec (resident)
            ],
            out_specs=pl.BlockSpec((tile_m, d_model), lambda i, k: (i, 0)),
            scratch_shapes=[pltpu.VMEM((tile_m, d_model), jnp.float32)],
        ),
        compiler_params=pltpu.CompilerParams(
            dimension_semantics=("parallel", "arbitrary"),
            vmem_limit_bytes=vmem_limit,
        ),
        cost_estimate=cost,
    )(x_lo, w_enc_lo, b_enc2, thr2, w_dec_lo, b_dec2)


# ---------------------------------------------------------------------------
# Reference (matches the PyTorch module, with matmul operands in compute_dtype)
# ---------------------------------------------------------------------------
def _reference_forward(x, W_enc, W_dec, threshold, b_enc, b_dec,
                       compute_dtype=jnp.float32):
    xl = x.astype(compute_dtype)
    pre = jnp.dot(xl, W_enc.astype(compute_dtype),
                  preferred_element_type=jnp.float32) + b_enc
    acts = jnp.where(pre > threshold, jnp.maximum(pre, 0.0), 0.0)
    return jnp.dot(acts.astype(compute_dtype), W_dec.astype(compute_dtype),
                   preferred_element_type=jnp.float32) + b_dec


if __name__ == "__main__":
    # Small deterministic synthetic setup consistent with the module:
    #   W_enc [d_model, d_sae], W_dec [d_sae, d_model], threshold/b_enc [d_sae], b_dec [d_model].
    # Tile sizes chosen so both grid axes have >1 step (exercises the streaming accumulator).
    seq, d_model, d_sae = 256, 256, 1024
    tile_m, tile_s = 128, 512

    key = jax.random.PRNGKey(0)
    kx, ke, kd, kt, kbe, kbd = jax.random.split(key, 6)
    x = jax.random.normal(kx, (seq, d_model), dtype=jnp.float32)
    W_enc = jax.random.normal(ke, (d_model, d_sae), dtype=jnp.float32) * 0.05
    W_dec = jax.random.normal(kd, (d_sae, d_model), dtype=jnp.float32) * 0.05
    threshold = jax.random.uniform(kt, (d_sae,), dtype=jnp.float32) * 0.1
    b_enc = jax.random.normal(kbe, (d_sae,), dtype=jnp.float32) * 0.01
    b_dec = jax.random.normal(kbd, (d_model,), dtype=jnp.float32) * 0.01

    # Pre-cast weights ONCE (out of the per-call hot path); kernel casts are then no-ops.
    W_enc_bf16 = W_enc.astype(jnp.bfloat16)
    W_dec_bf16 = W_dec.astype(jnp.bfloat16)

    recon = jumprelu_sae_forward(x, W_enc_bf16, W_dec_bf16, threshold, b_enc, b_dec,
                                 tile_m=tile_m, tile_s=tile_s,
                                 compute_dtype=jnp.bfloat16)
    recon = jax.block_until_ready(recon)

    assert recon.shape == (seq, d_model) and recon.dtype == x.dtype

    # Check against a bf16-matched reference (same MXU input precision as the kernel).
    ref_bf16 = _reference_forward(x, W_enc, W_dec, threshold, b_enc, b_dec,
                                  compute_dtype=jnp.bfloat16)
    assert jnp.allclose(recon, ref_bf16, atol=1e-2, rtol=1e-2), \
        "mismatch vs bf16-matched reference"

    # Loose sanity check against the pure-f32 module semantics (JumpReLU is
    # discontinuous, so bf16 gating near a threshold can flip individual features).
    ref_f32 = _reference_forward(x, W_enc, W_dec, threshold, b_enc, b_dec,
                                 compute_dtype=jnp.float32)
    assert jnp.allclose(recon, ref_f32, atol=0.1, rtol=0.1), \
        "mismatch vs f32 reference"

    # Also exercise the auto-tiling path (tile_m/tile_s selected from VMEM capacity).
    recon_auto = jumprelu_sae_forward(x, W_enc_bf16, W_dec_bf16, threshold, b_enc, b_dec,
                                      compute_dtype=jnp.bfloat16)
    recon_auto = jax.block_until_ready(recon_auto)
    assert jnp.allclose(recon_auto, ref_bf16, atol=1e-2, rtol=1e-2), \
        "auto-tiled path mismatch vs bf16-matched reference"

    print("KERNEL_OK")
</pallas_src>

<mosaic_0001>
module attributes {stable_mosaic.version = 11 : i64} {
  func.func @_jumprelu_sae_kernel(%arg0: i32, %arg1: i32, %arg2: memref<128x256xbf16, #tpu.memory_space<vmem>>, %arg3: memref<256x512xbf16, #tpu.memory_space<vmem>>, %arg4: memref<1x512xf32, #tpu.memory_space<vmem>>, %arg5: memref<1x512xf32, #tpu.memory_space<vmem>>, %arg6: memref<512x256xbf16, #tpu.memory_space<vmem>>, %arg7: memref<1x256xf32, #tpu.memory_space<vmem>>, %arg8: memref<128x256xf32, #tpu.memory_space<vmem>>, %arg9: memref<128x256xf32, #tpu.memory_space<vmem>>) attributes {dimension_semantics = [#tpu.dimension_semantics<parallel>, #tpu.dimension_semantics<arbitrary>], iteration_bounds = array<i64: 2, 2>, scalar_prefetch = 0 : i64, scratch_operands = 1 : i64, tpu.core_type = #tpu.core_type<tc>, window_params = [{transform_indices = @transform_0, window_bounds = array<i64: 128, 256>}, {transform_indices = @transform_1, window_bounds = array<i64: 256, 512>}, {transform_indices = @transform_2, window_bounds = array<i64: 1, 512>}, {transform_indices = @transform_3, window_bounds = array<i64: 1, 512>}, {transform_indices = @transform_4, window_bounds = array<i64: 512, 256>}, {pipeline_mode = #tpu.pipeline_mode<synchronous>, transform_indices = @transform_5, window_bounds = array<i64: 1, 256>}, {transform_indices = @transform_6, window_bounds = array<i64: 128, 256>}]} {
    %c0_i32 = arith.constant 0 : i32
    %0 = arith.cmpi eq, %arg1, %c0_i32 : i32
    %1 = arith.extui %0 : i1 to i32
    %c0_i32_0 = arith.constant 0 : i32
    %2 = arith.cmpi ne, %1, %c0_i32_0 : i32
    scf.if %2 {
      %cst_18 = arith.constant 0.000000e+00 : f32
      %25 = vector.broadcast %cst_18 : f32 to vector<128x256xf32>
      %c0_19 = arith.constant 0 : index
      %c0_20 = arith.constant 0 : index
      %26 = vector.load %arg9[%c0_19, %c0_20] : memref<128x256xf32, #tpu.memory_space<vmem>>, vector<128x256xf32>
      tpu.vector_store %arg9[%c0_19, %c0_20], %25 {strides = array<i32>} : memref<128x256xf32, #tpu.memory_space<vmem>>, vector<128x256xf32>,
    } else {
    }
    %c0 = arith.constant 0 : index
    %c0_1 = arith.constant 0 : index
    %3 = vector.load %arg2[%c0, %c0_1] : memref<128x256xbf16, #tpu.memory_space<vmem>>, vector<128x256xbf16>
    %c0_2 = arith.constant 0 : index
    %c0_3 = arith.constant 0 : index
    %4 = vector.load %arg3[%c0_2, %c0_3] : memref<256x512xbf16, #tpu.memory_space<vmem>>, vector<256x512xbf16>
    %cst = arith.constant dense<0.000000e+00> : vector<128x512xf32>
    %5 = tpu.matmul %3, %4, %cst {dimension_numbers = #tpu.dot_dimension_numbers<[1], [0], [0], [1], [0, 0, 1, 1], [], []>} : vector<128x256xbf16>, vector<256x512xbf16>, vector<128x512xf32> -> vector<128x512xf32>
    %c0_4 = arith.constant 0 : index
    %c0_5 = arith.constant 0 : index
    %6 = vector.load %arg4[%c0_4, %c0_5] : memref<1x512xf32, #tpu.memory_space<vmem>>, vector<1x512xf32>
    %7 = vector.broadcast %6 : vector<1x512xf32> to vector<128x512xf32>
    %8 = arith.addf %5, %7 : vector<128x512xf32>
    %c0_6 = arith.constant 0 : index
    %c0_7 = arith.constant 0 : index
    %9 = vector.load %arg5[%c0_6, %c0_7] : memref<1x512xf32, #tpu.memory_space<vmem>>, vector<1x512xf32>
    %10 = vector.broadcast %9 : vector<1x512xf32> to vector<128x512xf32>
    %11 = arith.cmpf ogt, %8, %10 : vector<128x512xf32>
    %cst_8 = arith.constant 0.000000e+00 : f32
    %12 = vector.broadcast %cst_8 : f32 to vector<128x512xf32>
    %13 = arith.maximumf %8, %12 : vector<128x512xf32>
    %cst_9 = arith.constant 0.000000e+00 : f32
    %14 = vector.broadcast %cst_9 : f32 to vector<128x512xf32>
    %15 = arith.select %11, %13, %14 : vector<128x512xi1>, vector<128x512xf32>
    %c0_10 = arith.constant 0 : index
    %c0_11 = arith.constant 0 : index
    %16 = vector.load %arg9[%c0_10, %c0_11] : memref<128x256xf32, #tpu.memory_space<vmem>>, vector<128x256xf32>
    %17 = arith.truncf %15 : vector<128x512xf32> to vector<128x512xbf16>
    %c0_12 = arith.constant 0 : index
    %c0_13 = arith.constant 0 : index
    %18 = vector.load %arg6[%c0_12, %c0_13] : memref<512x256xbf16, #tpu.memory_space<vmem>>, vector<512x256xbf16>
    %cst_14 = arith.constant dense<0.000000e+00> : vector<128x256xf32>
    %19 = tpu.matmul %17, %18, %cst_14 {dimension_numbers = #tpu.dot_dimension_numbers<[1], [0], [0], [1], [0, 0, 1, 1], [], []>} : vector<128x512xbf16>, vector<512x256xbf16>, vector<128x256xf32> -> vector<128x256xf32>
    %20 = arith.addf %16, %19 : vector<128x256xf32>
    %c0_15 = arith.constant 0 : index
    %c0_16 = arith.constant 0 : index
    %21 = vector.load %arg9[%c0_15, %c0_16] : memref<128x256xf32, #tpu.memory_space<vmem>>, vector<128x256xf32>
    tpu.vector_store %arg9[%c0_15, %c0_16], %20 {strides = array<i32>} : memref<128x256xf32, #tpu.memory_space<vmem>>, vector<128x256xf32>,
    %c1_i32 = arith.constant 1 : i32
    %22 = arith.cmpi eq, %arg1, %c1_i32 : i32
    %23 = arith.extui %22 : i1 to i32
    %c0_i32_17 = arith.constant 0 : i32
    %24 = arith.cmpi ne, %23, %c0_i32_17 : i32
    scf.if %24 {
      %c0_18 = arith.constant 0 : index
      %c0_19 = arith.constant 0 : index
      %25 = vector.load %arg9[%c0_18, %c0_19] : memref<128x256xf32, #tpu.memory_space<vmem>>, vector<128x256xf32>
      %c0_20 = arith.constant 0 : index
      %c0_21 = arith.constant 0 : index
      %26 = vector.load %arg7[%c0_20, %c0_21] : memref<1x256xf32, #tpu.memory_space<vmem>>, vector<1x256xf32>
      %27 = vector.broadcast %26 : vector<1x256xf32> to vector<128x256xf32>
      %28 = arith.addf %25, %27 : vector<128x256xf32>
      %c0_22 = arith.constant 0 : index
      %c0_23 = arith.constant 0 : index
      %29 = vector.load %arg8[%c0_22, %c0_23] : memref<128x256xf32, #tpu.memory_space<vmem>>, vector<128x256xf32>
      tpu.vector_store %arg8[%c0_22, %c0_23], %28 {strides = array<i32>} : memref<128x256xf32, #tpu.memory_space<vmem>>, vector<128x256xf32>,
    } else {
    }
    return
  }
  func.func @transform_0(%arg0: i32, %arg1: i32) -> (i32, i32) {
    %c0_i32 = arith.constant 0 : i32
    %c0_i32_0 = arith.constant 0 : i32
    return %arg0, %c0_i32 : i32, i32
  }
  func.func @transform_1(%arg0: i32, %arg1: i32) -> (i32, i32) {
    %c0_i32 = arith.constant 0 : i32
    %c0_i32_0 = arith.constant 0 : i32
    return %c0_i32, %arg1 : i32, i32
  }
  func.func @transform_2(%arg0: i32, %arg1: i32) -> (i32, i32) {
    %c0_i32 = arith.constant 0 : i32
    %c0_i32_0 = arith.constant 0 : i32
    return %c0_i32, %arg1 : i32, i32
  }
  func.func @transform_3(%arg0: i32, %arg1: i32) -> (i32, i32) {
    %c0_i32 = arith.constant 0 : i32
    %c0_i32_0 = arith.constant 0 : i32
    return %c0_i32, %arg1 : i32, i32
  }
  func.func @transform_4(%arg0: i32, %arg1: i32) -> (i32, i32) {
    %c0_i32 = arith.constant 0 : i32
    %c0_i32_0 = arith.constant 0 : i32
    return %arg1, %c0_i32 : i32, i32
  }
  func.func @transform_5(%arg0: i32, %arg1: i32) -> (i32, i32) {
    %c0_i32 = arith.constant 0 : i32
    %c0_i32_0 = arith.constant 0 : i32
    %c0_i32_1 = arith.constant 0 : i32
    return %c0_i32, %c0_i32_0 : i32, i32
  }
  func.func @transform_6(%arg0: i32, %arg1: i32) -> (i32, i32) {
    %c0_i32 = arith.constant 0 : i32
    %c0_i32_0 = arith.constant 0 : i32
    return %arg0, %c0_i32 : i32, i32
  }
}

</mosaic_0001>

<llo_original>
// kernel: jumprelu_sae_forward.1
$region0: #{jumprelu_sae_forward.1}
  #allocation0 [shape = 'u32[]', space=smem, size = 0x4, offset = 0x4, fixed_abs, tag = 'smem constant byte address 0x4 - core index']
  #allocation1 [shape = 'u32[144,128]{1,0:T(1,128)}', space=vmem, size = 0x12000, scoped, tag = 'internal scratch']
  #allocation2 [shape = 'f32[128,256]{1,0:T(8,128)}', space=vmem, size = 0x20000, scoped, tag = 'scratch operand']
  %s0 = inlined_call_operand.vmem [shape: bf16[256,256], index: 0, kind: input, shape index: {}]
  %s1 = inlined_call_operand.hbm [shape: bf16[256,1024], index: 1, kind: input, shape index: {}]
  %s2 = inlined_call_operand.vmem [shape: f32[1,1024], index: 2, kind: input, shape index: {}]
  %s3 = inlined_call_operand.vmem [shape: f32[1,1024], index: 3, kind: input, shape index: {}]
  %s4 = inlined_call_operand.hbm [shape: bf16[1024,256], index: 4, kind: input, shape index: {}]
  %s5 = inlined_call_operand.vmem [shape: f32[1,256], index: 5, kind: input, shape index: {}]
  %s6 = inlined_call_operand.hbm [shape: f32[256,256], index: 6, kind: output, shape index: {}]
  %s7 = sld [smem:[#allocation0]]
  $region73: #{jumprelu_sae_forward.1} parent=0
    _
  %s9 = ssub.s32 1, %s7
  %s10 = scalar_select 0, %s9, %s7
  $region1: #{jumprelu_sae_forward.1} parent=0
    #allocation3 [shape = 'u8[524288]{0}', space=vmem, size = 0x80000, scoped, tag = 'input window, operand 1']
    #allocation4 [shape = 's32[2]{0}', space=sflag, size = 0x8, scoped, tag = 'scoped memory for jumprelu_sae_forward.1']
    #allocation5 [shape = 's32[2]{0}', space=sflag, size = 0x8, scoped, tag = 'scoped memory for jumprelu_sae_forward.1']
    #allocation6 [shape = 'u8[524288]{0}', space=vmem, size = 0x80000, scoped, tag = 'input window, operand 4']
    #allocation7 [shape = 's32[2]{0}', space=sflag, size = 0x8, scoped, tag = 'scoped memory for jumprelu_sae_forward.1']
    #allocation8 [shape = 'u8[262144]{0}', space=vmem, size = 0x40000, scoped, tag = 'output window, operand 0']
    %11 = vsyncpa [#allocation4], 0
    %s12 = scalar_lea.sflag [#allocation4], 1
    %13 = vsyncpa %s12, 0
    %14 = vsyncpa [#allocation7], 0
    %s15 = scalar_lea.sflag [#allocation7], 1
    %16 = vsyncpa %s15, 0
    %17 = vsyncpa [#allocation5], 0
    %s18 = scalar_lea.sflag [#allocation5], 1
    %19 = vsyncpa %s18, 0
    loop: start=0, step=1, limit=6
    $region2: #{jumprelu_sae_forward.1} parent=1 // loop_pre_header
      _
    $region3: #{jumprelu_sae_forward.1} parent=1 // loop_header
      %s21 = sphi 0, %s25
      %p22 = scmp.ge.s32.totalorder %s21, 6
      %s28 = sphi 0, %s40
      %s29 = sphi 0, %s36
      %s30 = sphi 0, %s28
      %s31 = sphi 0, %s29
      %s32 = sphi 0, %s30
      %s33 = sphi 0, %s31
      %s43 = sphi 0, %s45
      %s46 = sphi 0, %s43
      %s47 = sphi 0, %s46
      %s63 = sphi 0, %s47
      %s69 = sphi 0, %s71
      %s72 = sphi 0, %s69
      %s73 = sphi 0, %s72
      %s89 = sphi 0, %s73
      %s95 = sphi 0, %s97
      %s98 = sphi 0, %s95
      %s99 = sphi 0, %s98
      %s115 = sphi 0, %s99
      %s121 = sphi 0, %s123
      %s124 = sphi 0, %s121
      %s125 = sphi 0, %s124
      %s141 = sphi 0, %s125
      %s147 = sphi 0, %s149
      %s150 = sphi 0, %s147
      %s151 = sphi 0, %s150
      %s167 = sphi 0, %s151
      %s171 = sphi 0, %s171
      %s173 = sphi 0, %s171
      %s174 = sphi 0, %s173
      %s188 = sphi 0, %s174
      %s194 = sphi 0, %s196
      %s197 = sphi 0, %s194
      %s198 = sphi 0, %s197
      %s214 = sphi 0, %s198
    $region4: #{jumprelu_sae_forward.1} parent=1 // loop_header_branch
      %24 = sbr.rel (%p22) target = $region8
    $region5: #{jumprelu_sae_forward.1} parent=1 // loop_body
      %s26 = ssub.s32 %s21, 1
      %s27 = ssub.s32 %s21, 2
      %s34 = sadd.s32 1, %s29
      %p35 = scmp.ge.s32.totalorder %s34, 2
      %s36 = scalar_select %p35, 0, %s34
      %s37 = sadd.s32 1, %s28
      %s38 = scalar_select %p35, %s37, %s28
      %p39 = scmp.ge.s32.totalorder %s38, 2
      %s40 = scalar_select %p39, 0, %s38
      %s41 = ssub.s32 %s28, %s40
      %p42 = scmp.eq.s32.totalorder %s41, 0
      %s44 = sadd.s32 %s43, 1
      %s45 = scalar_select %p42, %s43, %s44
      %p48 = pneg %p42
      %p49 = scmp.eq.s32.totalorder %s21, 3
      %p50 = por %p48, %p49
      %p51 = scmp.ne.s32.totalorder %s43, %s46
      %p52 = scmp.eq.s32.totalorder %s21, 0
      %p53 = por %p51, %p52
      %p54 = scmp.ne.s32.totalorder %s43, %s46
      %p55 = scmp.eq.s32.totalorder %s26, 3
      %p56 = por %p54, %p55
      %p57 = scmp.ne.s32.totalorder %s46, %s47
      %p58 = scmp.eq.s32.totalorder %s26, 0
      %p59 = por %p57, %p58
      %p60 = scmp.ne.s32.totalorder %s46, %s47
      %p61 = scmp.eq.s32.totalorder %s27, 3
      %p62 = por %p60, %p61
      %p64 = scmp.ne.s32.totalorder %s47, %s63
      %p65 = scmp.eq.s32.totalorder %s27, 0
      %p66 = por %p64, %p65
      %s67 = ssub.s32 %s29, %s36
      %p68 = scmp.eq.s32.totalorder %s67, 0
      %s70 = sadd.s32 %s69, 1
      %s71 = scalar_select %p68, %s69, %s70
      %p74 = pneg %p68
      %p75 = scmp.eq.s32.totalorder %s21, 3
      %p76 = por %p74, %p75
      %p77 = scmp.ne.s32.totalorder %s69, %s72
      %p78 = scmp.eq.s32.totalorder %s21, 0
      %p79 = por %p77, %p78
      %p80 = scmp.ne.s32.totalorder %s69, %s72
      %p81 = scmp.eq.s32.totalorder %s26, 3
      %p82 = por %p80, %p81
      %p83 = scmp.ne.s32.totalorder %s72, %s73
      %p84 = scmp.eq.s32.totalorder %s26, 0
      %p85 = por %p83, %p84
      %p86 = scmp.ne.s32.totalorder %s72, %s73
      %p87 = scmp.eq.s32.totalorder %s27, 3
      %p88 = por %p86, %p87
      %p90 = scmp.ne.s32.totalorder %s73, %s89
      %p91 = scmp.eq.s32.totalorder %s27, 0
      %p92 = por %p90, %p91
      %s93 = ssub.s32 %s29, %s36
      %p94 = scmp.eq.s32.totalorder %s93, 0
      %s96 = sadd.s32 %s95, 1
      %s97 = scalar_select %p94, %s95, %s96
      %p100 = pneg %p94
      %p101 = scmp.eq.s32.totalorder %s21, 3
      %p102 = por %p100, %p101
      %p103 = scmp.ne.s32.totalorder %s95, %s98
      %p104 = scmp.eq.s32.totalorder %s21, 0
      %p105 = por %p103, %p104
      %p106 = scmp.ne.s32.totalorder %s95, %s98
      %p107 = scmp.eq.s32.totalorder %s26, 3
      %p108 = por %p106, %p107
      %p109 = scmp.ne.s32.totalorder %s98, %s99
      %p110 = scmp.eq.s32.totalorder %s26, 0
      %p111 = por %p109, %p110
      %p112 = scmp.ne.s32.totalorder %s98, %s99
      %p113 = scmp.eq.s32.totalorder %s27, 3
      %p114 = por %p112, %p113
      %p116 = scmp.ne.s32.totalorder %s99, %s115
      %p117 = scmp.eq.s32.totalorder %s27, 0
      %p118 = por %p116, %p117
      %s119 = ssub.s32 %s29, %s36
      %p120 = scmp.eq.s32.totalorder %s119, 0
      %s122 = sadd.s32 %s121, 1
      %s123 = scalar_select %p120, %s121, %s122
      %p126 = pneg %p120
      %p127 = scmp.eq.s32.totalorder %s21, 3
      %p128 = por %p126, %p127
      %p129 = scmp.ne.s32.totalorder %s121, %s124
      %p130 = scmp.eq.s32.totalorder %s21, 0
      %p131 = por %p129, %p130
      %p132 = scmp.ne.s32.totalorder %s121, %s124
      %p133 = scmp.eq.s32.totalorder %s26, 3
      %p134 = por %p132, %p133
      %p135 = scmp.ne.s32.totalorder %s124, %s125
      %p136 = scmp.eq.s32.totalorder %s26, 0
      %p137 = por %p135, %p136
      %p138 = scmp.ne.s32.totalorder %s124, %s125
      %p139 = scmp.eq.s32.totalorder %s27, 3
      %p140 = por %p138, %p139
      %p142 = scmp.ne.s32.totalorder %s125, %s141
      %p143 = scmp.eq.s32.totalorder %s27, 0
      %p144 = por %p142, %p143
      %s145 = ssub.s32 %s29, %s36
      %p146 = scmp.eq.s32.totalorder %s145, 0
      %s148 = sadd.s32 %s147, 1
      %s149 = scalar_select %p146, %s147, %s148
      %p152 = pneg %p146
      %p153 = scmp.eq.s32.totalorder %s21, 3
      %p154 = por %p152, %p153
      %p155 = scmp.ne.s32.totalorder %s147, %s150
      %p156 = scmp.eq.s32.totalorder %s21, 0
      %p157 = por %p155, %p156
      %p158 = scmp.ne.s32.totalorder %s147, %s150
      %p159 = scmp.eq.s32.totalorder %s26, 3
      %p160 = por %p158, %p159
      %p161 = scmp.ne.s32.totalorder %s150, %s151
      %p162 = scmp.eq.s32.totalorder %s26, 0
      %p163 = por %p161, %p162
      %p164 = scmp.ne.s32.totalorder %s150, %s151
      %p165 = scmp.eq.s32.totalorder %s27, 3
      %p166 = por %p164, %p165
      %p168 = scmp.ne.s32.totalorder %s151, %s167
      %p169 = scmp.eq.s32.totalorder %s27, 0
      %p170 = por %p168, %p169
      %s172 = sadd.s32 %s171, 1
      %p175 = scmp.eq.s32.totalorder %s21, 3
      %p176 = scmp.ne.s32.totalorder %s171, %s173
      %p177 = scmp.eq.s32.totalorder %s21, 0
      %p178 = por %p176, %p177
      %p179 = scmp.ne.s32.totalorder %s171, %s173
      %p180 = scmp.eq.s32.totalorder %s26, 3
      %p181 = por %p179, %p180
      %p182 = scmp.ne.s32.totalorder %s173, %s174
      %p183 = scmp.eq.s32.totalorder %s26, 0
      %p184 = por %p182, %p183
      %p185 = scmp.ne.s32.totalorder %s173, %s174
      %p186 = scmp.eq.s32.totalorder %s27, 3
      %p187 = por %p185, %p186
      %p189 = scmp.ne.s32.totalorder %s174, %s188
      %p190 = scmp.eq.s32.totalorder %s27, 0
      %p191 = por %p189, %p190
      %s192 = ssub.s32 %s28, %s40
      %p193 = scmp.eq.s32.totalorder %s192, 0
      %s195 = sadd.s32 %s194, 1
      %s196 = scalar_select %p193, %s194, %s195
      %p199 = pneg %p193
      %p200 = scmp.eq.s32.totalorder %s21, 3
      %p201 = por %p199, %p200
      %p202 = scmp.ne.s32.totalorder %s194, %s197
      %p203 = scmp.eq.s32.totalorder %s21, 0
      %p204 = por %p202, %p203
      %p205 = scmp.ne.s32.totalorder %s194, %s197
      %p206 = scmp.eq.s32.totalorder %s26, 3
      %p207 = por %p205, %p206
      %p208 = scmp.ne.s32.totalorder %s197, %s198
      %p209 = scmp.eq.s32.totalorder %s26, 0
      %p210 = por %p208, %p209
      %p211 = scmp.ne.s32.totalorder %s197, %s198
      %p212 = scmp.eq.s32.totalorder %s27, 3
      %p213 = por %p211, %p212
      %p215 = scmp.ne.s32.totalorder %s198, %s214
      %p216 = scmp.eq.s32.totalorder %s27, 0
      %p217 = por %p215, %p216
      %p218 = scmp.le.s32.totalorder 1, %s21
      %p219 = scmp.lt.s32.totalorder %s21, 5
      %p220 = pnand %p218, %p219
      %p221 = pneg %p220
      // Predicated region
      $region9: #{jumprelu_sae_forward.1} parent=5 // pred_check
        _
      $region10: #{jumprelu_sae_forward.1} parent=5 // pred_check_branch
        %223 = sbr.rel (%p220) target = $region12
      $region11: #{jumprelu_sae_forward.1} parent=5 // pred_region
        %s224 = ssub.s32 %s21, 1
        // Predicated region
        $region13: #{jumprelu_sae_forward.1} parent=11 // pred_check
          %p225 = pneg %p184
        $region14: #{jumprelu_sae_forward.1} parent=11 // pred_check_branch
          %227 = sbr.rel (%p225) target = $region16
        $region15: #{jumprelu_sae_forward.1} parent=11 // pred_region
          _
        $region16: #{jumprelu_sae_forward.1} parent=11 // pred_fallthru
          _
      $region12: #{jumprelu_sae_forward.1} parent=5 // pred_fallthru
        _
      %p228 = scmp.lt.s32.totalorder %s21, 4
      // Predicated region
      $region17: #{jumprelu_sae_forward.1} parent=5 // pred_check
        %p229 = pneg %p228
      $region18: #{jumprelu_sae_forward.1} parent=5 // pred_check_branch
        %231 = sbr.rel (%p229) target = $region20
      $region19: #{jumprelu_sae_forward.1} parent=5 // pred_region
        // Predicated region
        $region21: #{jumprelu_sae_forward.1} parent=19 // pred_check
          %p232 = pneg %p53
        $region22: #{jumprelu_sae_forward.1} parent=19 // pred_check_branch
          %234 = sbr.rel (%p232) target = $region24
        $region23: #{jumprelu_sae_forward.1} parent=19 // pred_region
          %s235 = smul.u32 16, %s28
          %p236 = scmp.lt.s32.totalorder %s235, 31
          %s237 = scalar_select %p236, %s235, 31
          %s238 = smul.addr %s237, 2
          %s239 = smul.addr %s238, 4
          %s240 = scalar_lea.vmem %s0, %s239
          %s241 = smul.u32 16, %s28
        $region24: #{jumprelu_sae_forward.1} parent=19 // pred_fallthru
          _
        // Predicated region
        $region25: #{jumprelu_sae_forward.1} parent=19 // pred_check
          %p242 = pneg %p79
        $region26: #{jumprelu_sae_forward.1} parent=19 // pred_check_branch
          %244 = sbr.rel (%p242) target = $region28
        $region27: #{jumprelu_sae_forward.1} parent=19 // pred_region
          %s245 = sand.u32 %s69, 1
          %s246 = scalar_lea.sflag [#allocation4], %s245
          %s247 = sand.u32 %s69, 1
          %s248 = smul.addr %s247, 512
          %s249 = scalar_lea.vmem [#allocation3], %s248
          %s250 = smul.u32 4, %s29
          %s252 = ssub.s32 8192, 8192
          %253 = vsyncadd %s246, %s252
          %s254 = smul.addr %s250, 64
          %s255 = scalar_lea.hbm %s1, %s254
          %s256 = sshll.u32 %s249, 4
          %s257 = int_to_ptr.vmem [resolvable:$true] %s256
          %262 = dma.hbm_to_vmem [thread:$0]  %s255, 8192, %s257, %s246, 512, 256, 16
        $region28: #{jumprelu_sae_forward.1} parent=19 // pred_fallthru
          _
        // Predicated region
        $region29: #{jumprelu_sae_forward.1} parent=19 // pred_check
          %p263 = pneg %p105
        $region30: #{jumprelu_sae_forward.1} parent=19 // pred_check_branch
          %265 = sbr.rel (%p263) target = $region32
        $region31: #{jumprelu_sae_forward.1} parent=19 // pred_region
          %s266 = smul.u32 4, %s29
          %p267 = scmp.lt.s32.totalorder %s266, 7
          %s268 = scalar_select %p267, %s266, 7
          %s269 = scalar_lea.vmem %s2, %s268
          %s270 = smul.u32 4, %s29
        $region32: #{jumprelu_sae_forward.1} parent=19 // pred_fallthru
          _
        // Predicated region
        $region33: #{jumprelu_sae_forward.1} parent=19 // pred_check
          %p271 = pneg %p131
        $region34: #{jumprelu_sae_forward.1} parent=19 // pred_check_branch
          %273 = sbr.rel (%p271) target = $region36
        $region35: #{jumprelu_sae_forward.1} parent=19 // pred_region
          %s274 = smul.u32 4, %s29
          %p275 = scmp.lt.s32.totalorder %s274, 7
          %s276 = scalar_select %p275, %s274, 7
          %s277 = scalar_lea.vmem %s3, %s276
          %s278 = smul.u32 4, %s29
        $region36: #{jumprelu_sae_forward.1} parent=19 // pred_fallthru
          _
        // Predicated region
        $region37: #{jumprelu_sae_forward.1} parent=19 // pred_check
          %p279 = pneg %p157
        $region38: #{jumprelu_sae_forward.1} parent=19 // pred_check_branch
          %281 = sbr.rel (%p279) target = $region40
        $region39: #{jumprelu_sae_forward.1} parent=19 // pred_region
          %s282 = sand.u32 %s147, 1
          %s283 = scalar_lea.sflag [#allocation7], %s282
          %s284 = sand.u32 %s147, 1
          %s285 = smul.addr %s284, 512
          %s286 = scalar_lea.vmem [#allocation6], %s285
          %s287 = smul.u32 64, %s29
          %s289 = ssub.s32 8192, 8192
          %290 = vsyncadd %s283, %s289
          %s291 = smul.addr %s287, 2
          %s292 = smul.addr %s291, 64
          %s293 = scalar_lea.hbm %s4, %s292
          %s294 = sshll.u32 %s286, 4
          %s295 = int_to_ptr.vmem [resolvable:$true] %s294
          %300 = dma.hbm_to_vmem [thread:$0]  %s293, 8192, %s295, %s283, 128, 128, 8
        $region40: #{jumprelu_sae_forward.1} parent=19 // pred_fallthru
          _
      $region20: #{jumprelu_sae_forward.1} parent=5 // pred_fallthru
        _
      %p301 = scmp.le.s32.totalorder 1, %s21
      %p302 = scmp.lt.s32.totalorder %s21, 5
      %p303 = pnand %p301, %p302
      %p304 = pneg %p303
      // Predicated region
      $region41: #{jumprelu_sae_forward.1} parent=5 // pred_check
        _
      $region42: #{jumprelu_sae_forward.1} parent=5 // pred_check_branch
        %306 = sbr.rel (%p303) target = $region44
      $region43: #{jumprelu_sae_forward.1} parent=5 // pred_region
        %s307 = ssub.s32 %s21, 1
        %s308 = sand.u32 %s72, 1
        %s309 = scalar_lea.sflag [#allocation4], %s308
        %s310 = sand.u32 %s72, 1
        %s311 = smul.addr %s310, 512
        %s312 = scalar_lea.vmem [#allocation3], %s311
        // Predicated region
        $region45: #{jumprelu_sae_forward.1} parent=43 // pred_check
          %p313 = pneg %p85
        $region46: #{jumprelu_sae_forward.1} parent=43 // pred_check_branch
          %315 = sbr.rel (%p313) target = $region48
        $region47: #{jumprelu_sae_forward.1} parent=43 // pred_region
          %316 = dma.done %s309, 8192
        $region48: #{jumprelu_sae_forward.1} parent=43 // pred_fallthru
          _
        %s317 = sand.u32 %s150, 1
        %s318 = scalar_lea.sflag [#allocation7], %s317
        %s319 = sand.u32 %s150, 1
        %s320 = smul.addr %s319, 512
        %s321 = scalar_lea.vmem [#allocation6], %s320
        // Predicated region
        $region49: #{jumprelu_sae_forward.1} parent=43 // pred_check
          %p322 = pneg %p163
        $region50: #{jumprelu_sae_forward.1} parent=43 // pred_check_branch
          %324 = sbr.rel (%p322) target = $region52
        $region51: #{jumprelu_sae_forward.1} parent=43 // pred_region
          %325 = dma.done %s318, 8192
        $region52: #{jumprelu_sae_forward.1} parent=43 // pred_fallthru
          _
        %s326 = smul.u32 16, %s30
        %p327 = scmp.lt.s32.totalorder %s326, 31
        %s328 = scalar_select %p327, %s326, 31
        %s329 = smul.addr %s328, 2
        %s330 = smul.addr %s329, 4
        %s331 = scalar_lea.vmem %s0, %s330
        %p332 = pneg %p59
        %p333 = pneg %p56
        %s334 = sand.u32 %s72, 1
        %s335 = scalar_lea.sflag [#allocation4], %s334
        %s336 = sand.u32 %s72, 1
        %s337 = smul.addr %s336, 512
        %s338 = scalar_lea.vmem [#allocation3], %s337
        %p339 = pneg %p85
        %p340 = pneg %p82
        %s341 = smul.u32 4, %s31
        %p342 = scmp.lt.s32.totalorder %s341, 7
        %s343 = scalar_select %p342, %s341, 7
        %s344 = scalar_lea.vmem %s2, %s343
        %p345 = pneg %p111
        %p346 = pneg %p108
        %s347 = smul.u32 4, %s31
        %p348 = scmp.lt.s32.totalorder %s347, 7
        %s349 = scalar_select %p348, %s347, 7
        %s350 = scalar_lea.vmem %s3, %s349
        %p351 = pneg %p137
        %p352 = pneg %p134
        %s353 = sand.u32 %s150, 1
        %s354 = scalar_lea.sflag [#allocation7], %s353
        %s355 = sand.u32 %s150, 1
        %s356 = smul.addr %s355, 512
        %s357 = scalar_lea.vmem [#allocation6], %s356
        %p358 = pneg %p163
        %p359 = pneg %p160
        %p360 = pneg %p184
        %p361 = pneg %p181
        %p362 = pneg %p210
        %p363 = pneg %p207
        %s364 = sand.u32 %s197, 1
        %s365 = scalar_lea.sflag [#allocation5], %s364
        %s366 = sand.u32 %s197, 1
        %s367 = smul.addr %s366, 256
        %s368 = scalar_lea.vmem [#allocation8], %s367
        %s369 = smul.u32 16, %s30
        %p370 = scmp.lt.s32.totalorder %s369, 31
        %s371 = scalar_select %p370, %s369, 31
        %s372 = smul.addr %s371, 2
        %s373 = smul.addr %s372, 4
        %s374 = scalar_lea.vmem %s0, %s373
        %s375 = smul.u32 16, %s30
        %s376 = smul.u32 4, %s31
        %s377 = smul.u32 4, %s31
        %p378 = scmp.lt.s32.totalorder %s377, 7
        %s379 = scalar_select %p378, %s377, 7
        %s380 = scalar_lea.vmem %s2, %s379
        %s381 = smul.u32 4, %s31
        %s382 = smul.u32 4, %s31
        %p383 = scmp.lt.s32.totalorder %s382, 7
        %s384 = scalar_select %p383, %s382, 7
        %s385 = scalar_lea.vmem %s3, %s384
        %s386 = smul.u32 4, %s31
        %s387 = smul.u32 64, %s31
        %s388 = smul.u32 16, %s30
        %p389 = scmp.eq.s32.totalorder %s31, 0
        // Predicated region
        $region53: #{jumprelu_sae_forward.1} parent=43 // pred_check
          %p390 = pneg %p389
        $region54: #{jumprelu_sae_forward.1} parent=43 // pred_check_branch
          %392 = sbr.rel (%p390) target = $region56
        $region55: #{jumprelu_sae_forward.1} parent=43 // pred_region
          %393 = vst [vmem:[#allocation2] sm:$0xff] 0.0
          %394 = vst [vmem:[#allocation2 + $0x8] sm:$0xff] 0.0
          %395 = vst [vmem:[#allocation2 + $0x10] sm:$0xff] 0.0
          %396 = vst [vmem:[#allocation2 + $0x18] sm:$0xff] 0.0
          %397 = vst [vmem:[#allocation2 + $0x20] sm:$0xff] 0.0
          %398 = vst [vmem:[#allocation2 + $0x28] sm:$0xff] 0.0
          %399 = vst [vmem:[#allocation2 + $0x30] sm:$0xff] 0.0
          %400 = vst [vmem:[#allocation2 + $0x38] sm:$0xff] 0.0
          %401 = vst [vmem:[#allocation2 + $0x40] sm:$0xff] 0.0
          %402 = vst [vmem:[#allocation2 + $0x48] sm:$0xff] 0.0
          %403 = vst [vmem:[#allocation2 + $0x50] sm:$0xff] 0.0
          %404 = vst [vmem:[#allocation2 + $0x58] sm:$0xff] 0.0
          %405 = vst [vmem:[#allocation2 + $0x60] sm:$0xff] 0.0
          %406 = vst [vmem:[#allocation2 + $0x68] sm:$0xff] 0.0
          %407 = vst [vmem:[#allocation2 + $0x70] sm:$0xff] 0.0
          %408 = vst [vmem:[#allocation2 + $0x78] sm:$0xff] 0.0
          %409 = vst [vmem:[#allocation2 + $0x80] sm:$0xff] 0.0
          %410 = vst [vmem:[#allocation2 + $0x88] sm:$0xff] 0.0
          %411 = vst [vmem:[#allocation2 + $0x90] sm:$0xff] 0.0
          %412 = vst [vmem:[#allocation2 + $0x98] sm:$0xff] 0.0
          %413 = vst [vmem:[#allocation2 + $0xa0] sm:$0xff] 0.0
          %414 = vst [vmem:[#allocation2 + $0xa8] sm:$0xff] 0.0
          %415 = vst [vmem:[#allocation2 + $0xb0] sm:$0xff] 0.0
          %416 = vst [vmem:[#allocation2 + $0xb8] sm:$0xff] 0.0
          %417 = vst [vmem:[#allocation2 + $0xc0] sm:$0xff] 0.0
          %418 = vst [vmem:[#allocation2 + $0xc8] sm:$0xff] 0.0
          %419 = vst [vmem:[#allocation2 + $0xd0] sm:$0xff] 0.0
          %420 = vst [vmem:[#allocation2 + $0xd8] sm:$0xff] 0.0
          %421 = vst [vmem:[#allocation2 + $0xe0] sm:$0xff] 0.0
          %422 = vst [vmem:[#allocation2 + $0xe8] sm:$0xff] 0.0
          %423 = vst [vmem:[#allocation2 + $0xf0] sm:$0xff] 0.0
          %424 = vst [vmem:[#allocation2 + $0xf8] sm:$0xff] 0.0
        $region56: #{jumprelu_sae_forward.1} parent=43 // pred_fallthru
          _
        %v425 = vld [vmem:[%s374] sm:$0xff]
        %v426 = vld [vmem:[%s374 + $0x8] sm:$0xff]
        %v427 = vld [vmem:[%s374 + $0x10] sm:$0xff]
        %v428 = vld [vmem:[%s374 + $0x18] sm:$0xff]
        %v429 = vld [vmem:[%s374 + $0x20] sm:$0xff]
        %v430 = vld [vmem:[%s374 + $0x28] sm:$0xff]
        %v431 = vld [vmem:[%s374 + $0x30] sm:$0xff]
        %v432 = vld [vmem:[%s374 + $0x38] sm:$0xff]
        %v433 = vld [vmem:[%s374 + $0x40] sm:$0xff]
        %v434 = vld [vmem:[%s374 + $0x48] sm:$0xff]
        %v435 = vld [vmem:[%s374 + $0x50] sm:$0xff]
        %v436 = vld [vmem:[%s374 + $0x58] sm:$0xff]
        %v437 = vld [vmem:[%s374 + $0x60] sm:$0xff]
        %v438 = vld [vmem:[%s374 + $0x68] sm:$0xff]
        %v439 = vld [vmem:[%s374 + $0x70] sm:$0xff]
        %v440 = vld [vmem:[%s374 + $0x78] sm:$0xff]
        %v441 = vld [vmem:[%s312] sm:$0xff]
        %v442 = vld [vmem:[%s312 + $0x8] sm:$0xff]
        %v443 = vld [vmem:[%s312 + $0x10] sm:$0xff]
        %v444 = vld [vmem:[%s312 + $0x18] sm:$0xff]
        %v445 = vld [vmem:[%s312 + $0x20] sm:$0xff]
        %v446 = vld [vmem:[%s312 + $0x28] sm:$0xff]
        %v447 = vld [vmem:[%s312 + $0x30] sm:$0xff]
        %v448 = vld [vmem:[%s312 + $0x38] sm:$0xff]
        %v449 = vld [vmem:[%s312 + $0x40] sm:$0xff]
        %v450 = vld [vmem:[%s312 + $0x48] sm:$0xff]
        %v451 = vld [vmem:[%s312 + $0x50] sm:$0xff]
        %v452 = vld [vmem:[%s312 + $0x58] sm:$0xff]
        %v453 = vld [vmem:[%s312 + $0x60] sm:$0xff]
        %v454 = vld [vmem:[%s312 + $0x68] sm:$0xff]
        %v455 = vld [vmem:[%s312 + $0x70] sm:$0xff]
        %v456 = vld [vmem:[%s312 + $0x78] sm:$0xff]
        %v457 = vld [vmem:[%s312 + $0x80] sm:$0xff]
        %v458 = vld [vmem:[%s312 + $0x88] sm:$0xff]
        %v459 = vld [vmem:[%s312 + $0x90] sm:$0xff]
        %v460 = vld [vmem:[%s312 + $0x98] sm:$0xff]
        %v461 = vld [vmem:[%s312 + $0xa0] sm:$0xff]
        %v462 = vld [vmem:[%s312 + $0xa8] sm:$0xff]
        %v463 = vld [vmem:[%s312 + $0xb0] sm:$0xff]
        %v464 = vld [vmem:[%s312 + $0xb8] sm:$0xff]
        %v465 = vld [vmem:[%s312 + $0xc0] sm:$0xff]
        %v466 = vld [vmem:[%s312 + $0xc8] sm:$0xff]
        %v467 = vld [vmem:[%s312 + $0xd0] sm:$0xff]
        %v468 = vld [vmem:[%s312 + $0xd8] sm:$0xff]
        %v469 = vld [vmem:[%s312 + $0xe0] sm:$0xff]
        %v470 = vld [vmem:[%s312 + $0xe8] sm:$0xff]
        %v471 = vld [vmem:[%s312 + $0xf0] sm:$0xff]
        %v472 = vld [vmem:[%s312 + $0xf8] sm:$0xff]
        %v473 = vld [vmem:[%s312 + $0x100] sm:$0xff]
        %v474 = vld [vmem:[%s312 + $0x108] sm:$0xff]
        %v475 = vld [vmem:[%s312 + $0x110] sm:$0xff]
        %v476 = vld [vmem:[%s312 + $0x118] sm:$0xff]
        %v477 = vld [vmem:[%s312 + $0x120] sm:$0xff]
        %v478 = vld [vmem:[%s312 + $0x128] sm:$0xff]
        %v479 = vld [vmem:[%s312 + $0x130] sm:$0xff]
        %v480 = vld [vmem:[%s312 + $0x138] sm:$0xff]
        %v481 = vld [vmem:[%s312 + $0x140] sm:$0xff]
        %v482 = vld [vmem:[%s312 + $0x148] sm:$0xff]
        %v483 = vld [vmem:[%s312 + $0x150] sm:$0xff]
        %v484 = vld [vmem:[%s312 + $0x158] sm:$0xff]
        %v485 = vld [vmem:[%s312 + $0x160] sm:$0xff]
        %v486 = vld [vmem:[%s312 + $0x168] sm:$0xff]
        %v487 = vld [vmem:[%s312 + $0x170] sm:$0xff]
        %v488 = vld [vmem:[%s312 + $0x178] sm:$0xff]
        %v489 = vld [vmem:[%s312 + $0x180] sm:$0xff]
        %v490 = vld [vmem:[%s312 + $0x188] sm:$0xff]
        %v491 = vld [vmem:[%s312 + $0x190] sm:$0xff]
        %v492 = vld [vmem:[%s312 + $0x198] sm:$0xff]
        %v493 = vld [vmem:[%s312 + $0x1a0] sm:$0xff]
        %v494 = vld [vmem:[%s312 + $0x1a8] sm:$0xff]
        %v495 = vld [vmem:[%s312 + $0x1b0] sm:$0xff]
        %v496 = vld [vmem:[%s312 + $0x1b8] sm:$0xff]
        %v497 = vld [vmem:[%s312 + $0x1c0] sm:$0xff]
        %v498 = vld [vmem:[%s312 + $0x1c8] sm:$0xff]
        %v499 = vld [vmem:[%s312 + $0x1d0] sm:$0xff]
        %v500 = vld [vmem:[%s312 + $0x1d8] sm:$0xff]
        %v501 = vld [vmem:[%s312 + $0x1e0] sm:$0xff]
        %v502 = vld [vmem:[%s312 + $0x1e8] sm:$0xff]
        %v503 = vld [vmem:[%s312 + $0x1f0] sm:$0xff]
        %v504 = vld [vmem:[%s312 + $0x1f8] sm:$0xff]
        %v505 = vld [vmem:[%s380] sm:$0xf]
        %v507 = vlaneseq
        %v508 = vshrl.u32 %v507, 7
        %v509 = vsub.s32 0, %v508
        %v510 = vrot.slane %v505, %v509
        %v511 = vlaneseq
        %v512 = vshrl.u32 %v511, 7
        %v513 = vsub.s32 1, %v512
        %v514 = vrot.slane %v505, %v513
        %v515 = vlaneseq
        %v516 = vshrl.u32 %v515, 7
        %v517 = vsub.s32 2, %v516
        %v518 = vrot.slane %v505, %v517
        %v519 = vlaneseq
        %v520 = vshrl.u32 %v519, 7
        %v521 = vsub.s32 3, %v520
        %v522 = vrot.slane %v505, %v521
        %v543 = vunpack.c.l.b16 %v425
        %v544 = vunpack.c.h.b16 %v425
        %v545 = vunpack.c.l.b16 %v426
        %v546 = vunpack.c.h.b16 %v426
        %v547 = vunpack.c.l.b16 %v427
        %v548 = vunpack.c.h.b16 %v427
        %v549 = vunpack.c.l.b16 %v428
        %v550 = vunpack.c.h.b16 %v428
        %v551 = vunpack.c.l.b16 %v429
        %v552 = vunpack.c.h.b16 %v429
        %v553 = vunpack.c.l.b16 %v430
        %v554 = vunpack.c.h.b16 %v430
        %v555 = vunpack.c.l.b16 %v431
        %v556 = vunpack.c.h.b16 %v431
        %v557 = vunpack.c.l.b16 %v432
        %v558 = vunpack.c.h.b16 %v432
        %v559 = vunpack.c.l.b16 %v433
        %v560 = vunpack.c.h.b16 %v433
        %v561 = vunpack.c.l.b16 %v434
        %v562 = vunpack.c.h.b16 %v434
        %v563 = vunpack.c.l.b16 %v435
        %v564 = vunpack.c.h.b16 %v435
        %v565 = vunpack.c.l.b16 %v436
        %v566 = vunpack.c.h.b16 %v436
        %v567 = vunpack.c.l.b16 %v437
        %v568 = vunpack.c.h.b16 %v437
        %v569 = vunpack.c.l.b16 %v438
        %v570 = vunpack.c.h.b16 %v438
        %v571 = vunpack.c.l.b16 %v439
        %v572 = vunpack.c.h.b16 %v439
        %v573 = vunpack.c.l.b16 %v440
        %v574 = vunpack.c.h.b16 %v440
        %v575 = vpack.c.b16 %v545, %v543
        %v576 = vpack.c.b16 %v546, %v544
        %v577 = vpack.c.b16 %v549, %v547
        %v578 = vpack.c.b16 %v550, %v548
        %v579 = vpack.c.b16 %v553, %v551
        %v580 = vpack.c.b16 %v554, %v552
        %v581 = vpack.c.b16 %v557, %v555
        %v582 = vpack.c.b16 %v558, %v556
        %v583 = vpack.c.b16 %v561, %v559
        %v584 = vpack.c.b16 %v562, %v560
        %v585 = vpack.c.b16 %v565, %v563
        %v586 = vpack.c.b16 %v566, %v564
        %v587 = vpack.c.b16 %v569, %v567
        %v588 = vpack.c.b16 %v570, %v568
        %v589 = vpack.c.b16 %v573, %v571
        %v590 = vpack.c.b16 %v574, %v572
        %v671 = vunpack.c.l.b16 %v441
        %v672 = vunpack.c.h.b16 %v441
        %v673 = vunpack.c.l.b16 %v442
        %v674 = vunpack.c.h.b16 %v442
        %v675 = vunpack.c.l.b16 %v443
        %v676 = vunpack.c.h.b16 %v443
        %v677 = vunpack.c.l.b16 %v444
        %v678 = vunpack.c.h.b16 %v444
        %v679 = vunpack.c.l.b16 %v445
        %v680 = vunpack.c.h.b16 %v445
        %v681 = vunpack.c.l.b16 %v446
        %v682 = vunpack.c.h.b16 %v446
        %v683 = vunpack.c.l.b16 %v447
        %v684 = vunpack.c.h.b16 %v447
        %v685 = vunpack.c.l.b16 %v448
        %v686 = vunpack.c.h.b16 %v448
        %v687 = vunpack.c.l.b16 %v449
        %v688 = vunpack.c.h.b16 %v449
        %v689 = vunpack.c.l.b16 %v450
        %v690 = vunpack.c.h.b16 %v450
        %v691 = vunpack.c.l.b16 %v451
        %v692 = vunpack.c.h.b16 %v451
        %v693 = vunpack.c.l.b16 %v452
        %v694 = vunpack.c.h.b16 %v452
        %v695 = vunpack.c.l.b16 %v453
        %v696 = vunpack.c.h.b16 %v453
        %v697 = vunpack.c.l.b16 %v454
        %v698 = vunpack.c.h.b16 %v454
        %v699 = vunpack.c.l.b16 %v455
        %v700 = vunpack.c.h.b16 %v455
        %v701 = vunpack.c.l.b16 %v456
        %v702 = vunpack.c.h.b16 %v456
        %v703 = vunpack.c.l.b16 %v457
        %v704 = vunpack.c.h.b16 %v457
        %v705 = vunpack.c.l.b16 %v458
        %v706 = vunpack.c.h.b16 %v458
        %v707 = vunpack.c.l.b16 %v459
        %v708 = vunpack.c.h.b16 %v459
        %v709 = vunpack.c.l.b16 %v460
        %v710 = vunpack.c.h.b16 %v460
        %v711 = vunpack.c.l.b16 %v461
        %v712 = vunpack.c.h.b16 %v461
        %v713 = vunpack.c.l.b16 %v462
        %v714 = vunpack.c.h.b16 %v462
        %v715 = vunpack.c.l.b16 %v463
        %v716 = vunpack.c.h.b16 %v463
        %v717 = vunpack.c.l.b16 %v464
        %v718 = vunpack.c.h.b16 %v464
        %v719 = vunpack.c.l.b16 %v465
        %v720 = vunpack.c.h.b16 %v465
        %v721 = vunpack.c.l.b16 %v466
        %v722 = vunpack.c.h.b16 %v466
        %v723 = vunpack.c.l.b16 %v467
        %v724 = vunpack.c.h.b16 %v467
        %v725 = vunpack.c.l.b16 %v468
        %v726 = vunpack.c.h.b16 %v468
        %v727 = vunpack.c.l.b16 %v469
        %v728 = vunpack.c.h.b16 %v469
        %v729 = vunpack.c.l.b16 %v470
        %v730 = vunpack.c.h.b16 %v470
        %v731 = vunpack.c.l.b16 %v471
        %v732 = vunpack.c.h.b16 %v471
        %v733 = vunpack.c.l.b16 %v472
        %v734 = vunpack.c.h.b16 %v472
        %v735 = vunpack.c.l.b16 %v473
        %v736 = vunpack.c.h.b16 %v473
        %v737 = vunpack.c.l.b16 %v474
        %v738 = vunpack.c.h.b16 %v474
        %v739 = vunpack.c.l.b16 %v475
        %v740 = vunpack.c.h.b16 %v475
        %v741 = vunpack.c.l.b16 %v476
        %v742 = vunpack.c.h.b16 %v476
        %v743 = vunpack.c.l.b16 %v477
        %v744 = vunpack.c.h.b16 %v477
        %v745 = vunpack.c.l.b16 %v478
        %v746 = vunpack.c.h.b16 %v478
        %v747 = vunpack.c.l.b16 %v479
        %v748 = vunpack.c.h.b16 %v479
        %v749 = vunpack.c.l.b16 %v480
        %v750 = vunpack.c.h.b16 %v480
        %v751 = vunpack.c.l.b16 %v481
        %v752 = vunpack.c.h.b16 %v481
        %v753 = vunpack.c.l.b16 %v482
        %v754 = vunpack.c.h.b16 %v482
        %v755 = vunpack.c.l.b16 %v483
        %v756 = vunpack.c.h.b16 %v483
        %v757 = vunpack.c.l.b16 %v484
        %v758 = vunpack.c.h.b16 %v484
        %v759 = vunpack.c.l.b16 %v485
        %v760 = vunpack.c.h.b16 %v485
        %v761 = vunpack.c.l.b16 %v486
        %v762 = vunpack.c.h.b16 %v486
        %v763 = vunpack.c.l.b16 %v487
        %v764 = vunpack.c.h.b16 %v487
        %v765 = vunpack.c.l.b16 %v488
        %v766 = vunpack.c.h.b16 %v488
        %v767 = vunpack.c.l.b16 %v489
        %v768 = vunpack.c.h.b16 %v489
        %v769 = vunpack.c.l.b16 %v490
        %v770 = vunpack.c.h.b16 %v490
        %v771 = vunpack.c.l.b16 %v491
        %v772 = vunpack.c.h.b16 %v491
        %v773 = vunpack.c.l.b16 %v492
        %v774 = vunpack.c.h.b16 %v492
        %v775 = vunpack.c.l.b16 %v493
        %v776 = vunpack.c.h.b16 %v493
        %v777 = vunpack.c.l.b16 %v494
        %v778 = vunpack.c.h.b16 %v494
        %v779 = vunpack.c.l.b16 %v495
        %v780 = vunpack.c.h.b16 %v495
        %v781 = vunpack.c.l.b16 %v496
        %v782 = vunpack.c.h.b16 %v496
        %v783 = vunpack.c.l.b16 %v497
        %v784 = vunpack.c.h.b16 %v497
        %v785 = vunpack.c.l.b16 %v498
        %v786 = vunpack.c.h.b16 %v498
        %v787 = vunpack.c.l.b16 %v499
        %v788 = vunpack.c.h.b16 %v499
        %v789 = vunpack.c.l.b16 %v500
        %v790 = vunpack.c.h.b16 %v500
        %v791 = vunpack.c.l.b16 %v501
        %v792 = vunpack.c.h.b16 %v501
        %v793 = vunpack.c.l.b16 %v502
        %v794 = vunpack.c.h.b16 %v502
        %v795 = vunpack.c.l.b16 %v503
        %v796 = vunpack.c.h.b16 %v503
        %v797 = vunpack.c.l.b16 %v504
        %v798 = vunpack.c.h.b16 %v504
        %v799 = vpack.c.b16 %v675, %v671
        %v800 = vpack.c.b16 %v676, %v672
        %v801 = vpack.c.b16 %v677, %v673
        %v802 = vpack.c.b16 %v678, %v674
        %v803 = vpack.c.b16 %v683, %v679
        %v804 = vpack.c.b16 %v684, %v680
        %v805 = vpack.c.b16 %v685, %v681
        %v806 = vpack.c.b16 %v686, %v682
        %v807 = vpack.c.b16 %v691, %v687
        %v808 = vpack.c.b16 %v692, %v688
        %v809 = vpack.c.b16 %v693, %v689
        %v810 = vpack.c.b16 %v694, %v690
        %v811 = vpack.c.b16 %v699, %v695
        %v812 = vpack.c.b16 %v700, %v696
        %v813 = vpack.c.b16 %v701, %v697
        %v814 = vpack.c.b16 %v702, %v698
        %v815 = vpack.c.b16 %v707, %v703
        %v816 = vpack.c.b16 %v708, %v704
        %v817 = vpack.c.b16 %v709, %v705
        %v818 = vpack.c.b16 %v710, %v706
        %v819 = vpack.c.b16 %v715, %v711
        %v820 = vpack.c.b16 %v716, %v712
        %v821 = vpack.c.b16 %v717, %v713
        %v822 = vpack.c.b16 %v718, %v714
        %v823 = vpack.c.b16 %v723, %v719
        %v824 = vpack.c.b16 %v724, %v720
        %v825 = vpack.c.b16 %v725, %v721
        %v826 = vpack.c.b16 %v726, %v722
        %v827 = vpack.c.b16 %v731, %v727
        %v828 = vpack.c.b16 %v732, %v728
        %v829 = vpack.c.b16 %v733, %v729
        %v830 = vpack.c.b16 %v734, %v730
        %v831 = vpack.c.b16 %v739, %v735
        %v832 = vpack.c.b16 %v740, %v736
        %v833 = vpack.c.b16 %v741, %v737
        %v834 = vpack.c.b16 %v742, %v738
        %v835 = vpack.c.b16 %v747, %v743
        %v836 = vpack.c.b16 %v748, %v744
        %v837 = vpack.c.b16 %v749, %v745
        %v838 = vpack.c.b16 %v750, %v746
        %v839 = vpack.c.b16 %v755, %v751
        %v840 = vpack.c.b16 %v756, %v752
        %v841 = vpack.c.b16 %v757, %v753
        %v842 = vpack.c.b16 %v758, %v754
        %v843 = vpack.c.b16 %v763, %v759
        %v844 = vpack.c.b16 %v764, %v760
        %v845 = vpack.c.b16 %v765, %v761
        %v846 = vpack.c.b16 %v766, %v762
        %v847 = vpack.c.b16 %v771, %v767
        %v848 = vpack.c.b16 %v772, %v768
        %v849 = vpack.c.b16 %v773, %v769
        %v850 = vpack.c.b16 %v774, %v770
        %v851 = vpack.c.b16 %v779, %v775
        %v852 = vpack.c.b16 %v780, %v776
        %v853 = vpack.c.b16 %v781, %v777
        %v854 = vpack.c.b16 %v782, %v778
        %v855 = vpack.c.b16 %v787, %v783
        %v856 = vpack.c.b16 %v788, %v784
        %v857 = vpack.c.b16 %v789, %v785
        %v858 = vpack.c.b16 %v790, %v786
        %v859 = vpack.c.b16 %v795, %v791
        %v860 = vpack.c.b16 %v796, %v792
        %v861 = vpack.c.b16 %v797, %v793
        %v862 = vpack.c.b16 %v798, %v794
        %927 = vmatprep.subr.bf16.mxu0 %v828
        %928 = vmatpush1.bf16.msra.mxu0 %v827
        %929 = vmatprep.subr.bf16.mxu0 %v824
        %930 = vmatpush1.bf16.msra.mxu0 %v823
        %931 = vmatprep.subr.bf16.mxu0 %v820
        %932 = vmatpush1.bf16.msra.mxu0 %v819
        %933 = vmatprep.subr.bf16.mxu0 %v816
        %934 = vmatpush1.bf16.msra.mxu0 %v815
        %935 = vmatprep.subr.bf16.mxu0 %v812
        %936 = vmatpush1.bf16.msra.mxu0 %v811
        %937 = vmatprep.subr.bf16.mxu0 %v808
        %938 = vmatpush1.bf16.msra.mxu0 %v807
        %939 = vmatprep.subr.bf16.mxu0 %v804
        %940 = vmatpush1.bf16.msra.mxu0 %v803
        %941 = vmatprep.subr.bf16.mxu0 %v800
        %942 = vmatpush1.bf16.msra.mxu0 %v799
        %943 = vmatprep.subr.bf16.mxu0 %v860
        %944 = vmatpush2.bf16.msra.mxu0 %v859
        %945 = vmatprep.subr.bf16.mxu0 %v856
        %946 = vmatpush2.bf16.msra.mxu0 %v855
        %947 = vmatprep.subr.bf16.mxu0 %v852
        %948 = vmatpush2.bf16.msra.mxu0 %v851
        %949 = vmatprep.subr.bf16.mxu0 %v848
        %950 = vmatpush2.bf16.msra.mxu0 %v847
        %951 = vmatprep.subr.bf16.mxu0 %v844
        %952 = vmatpush2.bf16.msra.mxu0 %v843
        %953 = vmatprep.subr.bf16.mxu0 %v840
        %954 = vmatpush2.bf16.msra.mxu0 %v839
        %955 = vmatprep.subr.bf16.mxu0 %v836
        %956 = vmatpush2.bf16.msra.mxu0 %v835
        %957 = vmatprep.subr.bf16.mxu0 %v832
        %958 = vmatpush2.bf16.msra.mxu0 %v831
        %959 = vmatprep.mubr.bf16.mxu0 %v576
        %960 = vmatmul.mubr.bf16.gmra.mxu0 %v575
        %v961 = vpop.f32.mrf.mxu0
        %v962 = vadd.f32 %v510, %v961
        %v963 = vpop.f32.mrf.mxu0
        %v964 = vadd.f32 %v514, %v963
        %v965 = vpop.f32.mrf.mxu0
        %v966 = vadd.f32 %v510, %v965
        %v967 = vpop.f32.mrf.mxu0
        %v968 = vadd.f32 %v514, %v967
        %969 = vmatprep.mubr.bf16.mxu0 %v578
        %970 = vmatmul.mubr.bf16.gmra.mxu0 %v577
        %v971 = vpop.f32.mrf.mxu0
        %v972 = vadd.f32 %v510, %v971
        %v973 = vpop.f32.mrf.mxu0
        %v974 = vadd.f32 %v514, %v973
        %v975 = vpop.f32.mrf.mxu0
        %v976 = vadd.f32 %v510, %v975
        %v977 = vpop.f32.mrf.mxu0
        %v978 = vadd.f32 %v514, %v977
        %979 = vmatprep.mubr.bf16.mxu0 %v580
        %980 = vmatmul.mubr.bf16.gmra.mxu0 %v579
        %v981 = vpop.f32.mrf.mxu0
        %v982 = vadd.f32 %v510, %v981
        %v983 = vpop.f32.mrf.mxu0
        %v984 = vadd.f32 %v514, %v983
        %v985 = vpop.f32.mrf.mxu0
        %v986 = vadd.f32 %v510, %v985
        %v987 = vpop.f32.mrf.mxu0
        %v988 = vadd.f32 %v514, %v987
        %989 = vmatprep.mubr.bf16.mxu0 %v582
        %990 = vmatmul.mubr.bf16.gmra.mxu0 %v581
        %v991 = vpop.f32.mrf.mxu0
        %v992 = vadd.f32 %v510, %v991
        %v993 = vpop.f32.mrf.mxu0
        %v994 = vadd.f32 %v514, %v993
        %v995 = vpop.f32.mrf.mxu0
        %v996 = vadd.f32 %v510, %v995
        %v997 = vpop.f32.mrf.mxu0
        %v998 = vadd.f32 %v514, %v997
        %999 = vmatprep.mubr.bf16.mxu0 %v584
        %1000 = vmatmul.mubr.bf16.gmra.mxu0 %v583
        %v1001 = vpop.f32.mrf.mxu0
        %v1002 = vadd.f32 %v510, %v1001
        %v1003 = vpop.f32.mrf.mxu0
        %v1004 = vadd.f32 %v514, %v1003
        %v1005 = vpop.f32.mrf.mxu0
        %v1006 = vadd.f32 %v510, %v1005
        %v1007 = vpop.f32.mrf.mxu0
        %v1008 = vadd.f32 %v514, %v1007
        %1009 = vmatprep.mubr.bf16.mxu0 %v586
        %1010 = vmatmul.mubr.bf16.gmra.mxu0 %v585
        %v1011 = vpop.f32.mrf.mxu0
        %v1012 = vadd.f32 %v510, %v1011
        %v1013 = vpop.f32.mrf.mxu0
        %v1014 = vadd.f32 %v514, %v1013
        %v1015 = vpop.f32.mrf.mxu0
        %v1016 = vadd.f32 %v510, %v1015
        %v1017 = vpop.f32.mrf.mxu0
        %v1018 = vadd.f32 %v514, %v1017
        %1019 = vmatprep.mubr.bf16.mxu0 %v588
        %1020 = vmatmul.mubr.bf16.gmra.mxu0 %v587
        %v1021 = vpop.f32.mrf.mxu0
        %v1022 = vadd.f32 %v510, %v1021
        %v1023 = vpop.f32.mrf.mxu0
        %v1024 = vadd.f32 %v514, %v1023
        %v1025 = vpop.f32.mrf.mxu0
        %v1026 = vadd.f32 %v510, %v1025
        %v1027 = vpop.f32.mrf.mxu0
        %v1028 = vadd.f32 %v514, %v1027
        %1029 = vmatprep.mubr.bf16.mxu0 %v590
        %1030 = vmatmul.mubr.bf16.gmra.mxu0 %v589
        %v1031 = vpop.f32.mrf.mxu0
        %v1032 = vadd.f32 %v510, %v1031
        %v1033 = vpop.f32.mrf.mxu0
        %v1034 = vadd.f32 %v514, %v1033
        %v1035 = vpop.f32.mrf.mxu0
        %v1036 = vadd.f32 %v510, %v1035
        %v1037 = vpop.f32.mrf.mxu0
        %v1038 = vadd.f32 %v514, %v1037
        %1039 = vdwg.mxu0
        %1040 = vmatprep.subr.bf16.mxu0 %v830
        %1041 = vmatpush1.bf16.msra.mxu0 %v829
        %1042 = vmatprep.subr.bf16.mxu0 %v826
        %1043 = vmatpush1.bf16.msra.mxu0 %v825
        %1044 = vmatprep.subr.bf16.mxu0 %v822
        %1045 = vmatpush1.bf16.msra.mxu0 %v821
        %1046 = vmatprep.subr.bf16.mxu0 %v818
        %1047 = vmatpush1.bf16.msra.mxu0 %v817
        %1048 = vmatprep.subr.bf16.mxu0 %v814
        %1049 = vmatpush1.bf16.msra.mxu0 %v813
        %1050 = vmatprep.subr.bf16.mxu0 %v810
        %1051 = vmatpush1.bf16.msra.mxu0 %v809
        %1052 = vmatprep.subr.bf16.mxu0 %v806
        %1053 = vmatpush1.bf16.msra.mxu0 %v805
        %1054 = vmatprep.subr.bf16.mxu0 %v802
        %1055 = vmatpush1.bf16.msra.mxu0 %v801
        %1056 = vmatprep.subr.bf16.mxu0 %v862
        %1057 = vmatpush2.bf16.msra.mxu0 %v861
        %1058 = vmatprep.subr.bf16.mxu0 %v858
        %1059 = vmatpush2.bf16.msra.mxu0 %v857
        %1060 = vmatprep.subr.bf16.mxu0 %v854
        %1061 = vmatpush2.bf16.msra.mxu0 %v853
        %1062 = vmatprep.subr.bf16.mxu0 %v850
        %1063 = vmatpush2.bf16.msra.mxu0 %v849
        %1064 = vmatprep.subr.bf16.mxu0 %v846
        %1065 = vmatpush2.bf16.msra.mxu0 %v845
        %1066 = vmatprep.subr.bf16.mxu0 %v842
        %1067 = vmatpush2.bf16.msra.mxu0 %v841
        %1068 = vmatprep.subr.bf16.mxu0 %v838
        %1069 = vmatpush2.bf16.msra.mxu0 %v837
        %1070 = vmatprep.subr.bf16.mxu0 %v834
        %1071 = vmatpush2.bf16.msra.mxu0 %v833
        %1072 = vmatprep.mubr.bf16.mxu0 %v576
        %1073 = vmatmul.mubr.bf16.gmra.mxu0 %v575
        %v1074 = vpop.f32.mrf.mxu0
        %v1075 = vadd.f32 %v518, %v1074
        %v1076 = vpop.f32.mrf.mxu0
        %v1077 = vadd.f32 %v522, %v1076
        %v1078 = vpop.f32.mrf.mxu0
        %v1079 = vadd.f32 %v518, %v1078
        %v1080 = vpop.f32.mrf.mxu0
        %v1081 = vadd.f32 %v522, %v1080
        %1082 = vmatprep.mubr.bf16.mxu0 %v578
        %1083 = vmatmul.mubr.bf16.gmra.mxu0 %v577
        %v1084 = vpop.f32.mrf.mxu0
        %v1085 = vadd.f32 %v518, %v1084
        %v1086 = vpop.f32.mrf.mxu0
        %v1087 = vadd.f32 %v522, %v1086
        %v1088 = vpop.f32.mrf.mxu0
        %v1089 = vadd.f32 %v518, %v1088
        %v1090 = vpop.f32.mrf.mxu0
        %v1091 = vadd.f32 %v522, %v1090
        %1092 = vmatprep.mubr.bf16.mxu0 %v580
        %1093 = vmatmul.mubr.bf16.gmra.mxu0 %v579
        %v1094 = vpop.f32.mrf.mxu0
        %v1095 = vadd.f32 %v518, %v1094
        %v1096 = vpop.f32.mrf.mxu0
        %v1097 = vadd.f32 %v522, %v1096
        %v1098 = vpop.f32.mrf.mxu0
        %v1099 = vadd.f32 %v518, %v1098
        %v1100 = vpop.f32.mrf.mxu0
        %v1101 = vadd.f32 %v522, %v1100
        %1102 = vmatprep.mubr.bf16.mxu0 %v582
        %1103 = vmatmul.mubr.bf16.gmra.mxu0 %v581
        %v1104 = vpop.f32.mrf.mxu0
        %v1105 = vadd.f32 %v518, %v1104
        %v1106 = vpop.f32.mrf.mxu0
        %v1107 = vadd.f32 %v522, %v1106
        %v1108 = vpop.f32.mrf.mxu0
        %v1109 = vadd.f32 %v518, %v1108
        %v1110 = vpop.f32.mrf.mxu0
        %v1111 = vadd.f32 %v522, %v1110
        %1112 = vmatprep.mubr.bf16.mxu0 %v584
        %1113 = vmatmul.mubr.bf16.gmra.mxu0 %v583
        %v1114 = vpop.f32.mrf.mxu0
        %v1115 = vadd.f32 %v518, %v1114
        %v1116 = vpop.f32.mrf.mxu0
        %v1117 = vadd.f32 %v522, %v1116
        %v1118 = vpop.f32.mrf.mxu0
        %v1119 = vadd.f32 %v518, %v1118
        %v1120 = vpop.f32.mrf.mxu0
        %v1121 = vadd.f32 %v522, %v1120
        %1122 = vmatprep.mubr.bf16.mxu0 %v586
        %1123 = vmatmul.mubr.bf16.gmra.mxu0 %v585
        %v1124 = vpop.f32.mrf.mxu0
        %v1125 = vadd.f32 %v518, %v1124
        %v1126 = vpop.f32.mrf.mxu0
        %v1127 = vadd.f32 %v522, %v1126
        %v1128 = vpop.f32.mrf.mxu0
        %v1129 = vadd.f32 %v518, %v1128
        %v1130 = vpop.f32.mrf.mxu0
        %v1131 = vadd.f32 %v522, %v1130
        %1132 = vmatprep.mubr.bf16.mxu0 %v588
        %1133 = vmatmul.mubr.bf16.gmra.mxu0 %v587
        %v1134 = vpop.f32.mrf.mxu0
        %v1135 = vadd.f32 %v518, %v1134
        %v1136 = vpop.f32.mrf.mxu0
        %v1137 = vadd.f32 %v522, %v1136
        %v1138 = vpop.f32.mrf.mxu0
        %v1139 = vadd.f32 %v518, %v1138
        %v1140 = vpop.f32.mrf.mxu0
        %v1141 = vadd.f32 %v522, %v1140
        %1142 = vmatprep.mubr.bf16.mxu0 %v590
        %1143 = vmatmul.mubr.bf16.gmra.mxu0 %v589
        %v1144 = vpop.f32.mrf.mxu0
        %v1145 = vadd.f32 %v518, %v1144
        %v1146 = vpop.f32.mrf.mxu0
        %v1147 = vadd.f32 %v522, %v1146
        %v1148 = vpop.f32.mrf.mxu0
        %v1149 = vadd.f32 %v518, %v1148
        %v1150 = vpop.f32.mrf.mxu0
        %v1151 = vadd.f32 %v522, %v1150
        %1152 = vdwg.mxu0
        %v1153 = vld [vmem:[%s385] sm:$0xf]
        %v1155 = vlaneseq
        %v1156 = vshrl.u32 %v1155, 7
        %v1157 = vsub.s32 0, %v1156
        %v1158 = vrot.slane %v1153, %v1157
        %v1159 = vlaneseq
        %v1160 = vshrl.u32 %v1159, 7
        %v1161 = vsub.s32 1, %v1160
        %v1162 = vrot.slane %v1153, %v1161
        %v1163 = vlaneseq
        %v1164 = vshrl.u32 %v1163, 7
        %v1165 = vsub.s32 2, %v1164
        %v1166 = vrot.slane %v1153, %v1165
        %v1167 = vlaneseq
        %v1168 = vshrl.u32 %v1167, 7
        %v1169 = vsub.s32 3, %v1168
        %v1170 = vrot.slane %v1153, %v1169
        %vm1175 = vcmp.gt.f32.partialorder %v962, %v1158
        %vm1176 = vcmp.gt.f32.partialorder %v964, %v1162
        %vm1177 = vcmp.gt.f32.partialorder %v1075, %v1166
        %vm1178 = vcmp.gt.f32.partialorder %v1077, %v1170
        %vm1179 = vcmp.gt.f32.partialorder %v966, %v1158
        %vm1180 = vcmp.gt.f32.partialorder %v968, %v1162
        %vm1181 = vcmp.gt.f32.partialorder %v1079, %v1166
        %vm1182 = vcmp.gt.f32.partialorder %v1081, %v1170
        %vm1183 = vcmp.gt.f32.partialorder %v972, %v1158
        %vm1184 = vcmp.gt.f32.partialorder %v974, %v1162
        %vm1185 = vcmp.gt.f32.partialorder %v1085, %v1166
        %vm1186 = vcmp.gt.f32.partialorder %v1087, %v1170
        %vm1187 = vcmp.gt.f32.partialorder %v976, %v1158
        %vm1188 = vcmp.gt.f32.partialorder %v978, %v1162
        %vm1189 = vcmp.gt.f32.partialorder %v1089, %v1166
        %vm1190 = vcmp.gt.f32.partialorder %v1091, %v1170
        %vm1191 = vcmp.gt.f32.partialorder %v982, %v1158
        %vm1192 = vcmp.gt.f32.partialorder %v984, %v1162
        %vm1193 = vcmp.gt.f32.partialorder %v1095, %v1166
        %vm1194 = vcmp.gt.f32.partialorder %v1097, %v1170
        %vm1195 = vcmp.gt.f32.partialorder %v986, %v1158
        %vm1196 = vcmp.gt.f32.partialorder %v988, %v1162
        %vm1197 = vcmp.gt.f32.partialorder %v1099, %v1166
        %vm1198 = vcmp.gt.f32.partialorder %v1101, %v1170
        %vm1199 = vcmp.gt.f32.partialorder %v992, %v1158
        %vm1200 = vcmp.gt.f32.partialorder %v994, %v1162
        %vm1201 = vcmp.gt.f32.partialorder %v1105, %v1166
        %vm1202 = vcmp.gt.f32.partialorder %v1107, %v1170
        %vm1203 = vcmp.gt.f32.partialorder %v996, %v1158
        %vm1204 = vcmp.gt.f32.partialorder %v998, %v1162
        %vm1205 = vcmp.gt.f32.partialorder %v1109, %v1166
        %vm1206 = vcmp.gt.f32.partialorder %v1111, %v1170
        %vm1207 = vcmp.gt.f32.partialorder %v1002, %v1158
        %vm1208 = vcmp.gt.f32.partialorder %v1004, %v1162
        %vm1209 = vcmp.gt.f32.partialorder %v1115, %v1166
        %vm1210 = vcmp.gt.f32.partialorder %v1117, %v1170
        %vm1211 = vcmp.gt.f32.partialorder %v1006, %v1158
        %vm1212 = vcmp.gt.f32.partialorder %v1008, %v1162
        %vm1213 = vcmp.gt.f32.partialorder %v1119, %v1166
        %vm1214 = vcmp.gt.f32.partialorder %v1121, %v1170
        %vm1215 = vcmp.gt.f32.partialorder %v1012, %v1158
        %vm1216 = vcmp.gt.f32.partialorder %v1014, %v1162
        %vm1217 = vcmp.gt.f32.partialorder %v1125, %v1166
        %vm1218 = vcmp.gt.f32.partialorder %v1127, %v1170
        %vm1219 = vcmp.gt.f32.partialorder %v1016, %v1158
        %vm1220 = vcmp.gt.f32.partialorder %v1018, %v1162
        %vm1221 = vcmp.gt.f32.partialorder %v1129, %v1166
        %vm1222 = vcmp.gt.f32.partialorder %v1131, %v1170
        %vm1223 = vcmp.gt.f32.partialorder %v1022, %v1158
        %vm1224 = vcmp.gt.f32.partialorder %v1024, %v1162
        %vm1225 = vcmp.gt.f32.partialorder %v1135, %v1166
        %vm1226 = vcmp.gt.f32.partialorder %v1137, %v1170
        %vm1227 = vcmp.gt.f32.partialorder %v1026, %v1158
        %vm1228 = vcmp.gt.f32.partialorder %v1028, %v1162
        %vm1229 = vcmp.gt.f32.partialorder %v1139, %v1166
        %vm1230 = vcmp.gt.f32.partialorder %v1141, %v1170
        %vm1231 = vcmp.gt.f32.partialorder %v1032, %v1158
        %vm1232 = vcmp.gt.f32.partialorder %v1034, %v1162
        %vm1233 = vcmp.gt.f32.partialorder %v1145, %v1166
        %vm1234 = vcmp.gt.f32.partialorder %v1147, %v1170
        %vm1235 = vcmp.gt.f32.partialorder %v1036, %v1158
        %vm1236 = vcmp.gt.f32.partialorder %v1038, %v1162
        %vm1237 = vcmp.gt.f32.partialorder %v1149, %v1166
        %vm1238 = vcmp.gt.f32.partialorder %v1151, %v1170
        %v1239 = vmax.f32 %v962, 0.0
        %v1240 = vmax.f32 %v964, 0.0
        %v1241 = vmax.f32 %v1075, 0.0
        %v1242 = vmax.f32 %v1077, 0.0
        %v1243 = vmax.f32 %v966, 0.0
        %v1244 = vmax.f32 %v968, 0.0
        %v1245 = vmax.f32 %v1079, 0.0
        %v1246 = vmax.f32 %v1081, 0.0
        %v1247 = vmax.f32 %v972, 0.0
        %v1248 = vmax.f32 %v974, 0.0
        %v1249 = vmax.f32 %v1085, 0.0
        %v1250 = vmax.f32 %v1087, 0.0
        %v1251 = vmax.f32 %v976, 0.0
        %v1252 = vmax.f32 %v978, 0.0
        %v1253 = vmax.f32 %v1089, 0.0
        %v1254 = vmax.f32 %v1091, 0.0
        %v1255 = vmax.f32 %v982, 0.0
        %v1256 = vmax.f32 %v984, 0.0
        %v1257 = vmax.f32 %v1095, 0.0
        %v1258 = vmax.f32 %v1097, 0.0
        %v1259 = vmax.f32 %v986, 0.0
        %v1260 = vmax.f32 %v988, 0.0
        %v1261 = vmax.f32 %v1099, 0.0
        %v1262 = vmax.f32 %v1101, 0.0
        %v1263 = vmax.f32 %v992, 0.0
        %v1264 = vmax.f32 %v994, 0.0
        %v1265 = vmax.f32 %v1105, 0.0
        %v1266 = vmax.f32 %v1107, 0.0
        %v1267 = vmax.f32 %v996, 0.0
        %v1268 = vmax.f32 %v998, 0.0
        %v1269 = vmax.f32 %v1109, 0.0
        %v1270 = vmax.f32 %v1111, 0.0
        %v1271 = vmax.f32 %v1002, 0.0
        %v1272 = vmax.f32 %v1004, 0.0
        %v1273 = vmax.f32 %v1115, 0.0
        %v1274 = vmax.f32 %v1117, 0.0
        %v1275 = vmax.f32 %v1006, 0.0
        %v1276 = vmax.f32 %v1008, 0.0
        %v1277 = vmax.f32 %v1119, 0.0
        %v1278 = vmax.f32 %v1121, 0.0
        %v1279 = vmax.f32 %v1012, 0.0
        %v1280 = vmax.f32 %v1014, 0.0
        %v1281 = vmax.f32 %v1125, 0.0
        %v1282 = vmax.f32 %v1127, 0.0
        %v1283 = vmax.f32 %v1016, 0.0
        %v1284 = vmax.f32 %v1018, 0.0
        %v1285 = vmax.f32 %v1129, 0.0
        %v1286 = vmax.f32 %v1131, 0.0
        %v1287 = vmax.f32 %v1022, 0.0
        %v1288 = vmax.f32 %v1024, 0.0
        %v1289 = vmax.f32 %v1135, 0.0
        %v1290 = vmax.f32 %v1137, 0.0
        %v1291 = vmax.f32 %v1026, 0.0
        %v1292 = vmax.f32 %v1028, 0.0
        %v1293 = vmax.f32 %v1139, 0.0
        %v1294 = vmax.f32 %v1141, 0.0
        %v1295 = vmax.f32 %v1032, 0.0
        %v1296 = vmax.f32 %v1034, 0.0
        %v1297 = vmax.f32 %v1145, 0.0
        %v1298 = vmax.f32 %v1147, 0.0
        %v1299 = vmax.f32 %v1036, 0.0
        %v1300 = vmax.f32 %v1038, 0.0
        %v1301 = vmax.f32 %v1149, 0.0
        %v1302 = vmax.f32 %v1151, 0.0
        %v1303 = vsel %vm1175, %v1239, 0.0
        %v1304 = vsel %vm1176, %v1240, 0.0
        %v1305 = vsel %vm1177, %v1241, 0.0
        %v1306 = vsel %vm1178, %v1242, 0.0
        %v1307 = vsel %vm1179, %v1243, 0.0
        %v1308 = vsel %vm1180, %v1244, 0.0
        %v1309 = vsel %vm1181, %v1245, 0.0
        %v1310 = vsel %vm1182, %v1246, 0.0
        %v1311 = vsel %vm1183, %v1247, 0.0
        %v1312 = vsel %vm1184, %v1248, 0.0
        %v1313 = vsel %vm1185, %v1249, 0.0
        %v1314 = vsel %vm1186, %v1250, 0.0
        %v1315 = vsel %vm1187, %v1251, 0.0
        %v1316 = vsel %vm1188, %v1252, 0.0
        %v1317 = vsel %vm1189, %v1253, 0.0
        %v1318 = vsel %vm1190, %v1254, 0.0
        %v1319 = vsel %vm1191, %v1255, 0.0
        %v1320 = vsel %vm1192, %v1256, 0.0
        %v1321 = vsel %vm1193, %v1257, 0.0
        %v1322 = vsel %vm1194, %v1258, 0.0
        %v1323 = vsel %vm1195, %v1259, 0.0
        %v1324 = vsel %vm1196, %v1260, 0.0
        %v1325 = vsel %vm1197, %v1261, 0.0
        %v1326 = vsel %vm1198, %v1262, 0.0
        %v1327 = vsel %vm1199, %v1263, 0.0
        %v1328 = vsel %vm1200, %v1264, 0.0
        %v1329 = vsel %vm1201, %v1265, 0.0
        %v1330 = vsel %vm1202, %v1266, 0.0
        %v1331 = vsel %vm1203, %v1267, 0.0
        %v1332 = vsel %vm1204, %v1268, 0.0
        %v1333 = vsel %vm1205, %v1269, 0.0
        %v1334 = vsel %vm1206, %v1270, 0.0
        %v1335 = vsel %vm1207, %v1271, 0.0
        %v1336 = vsel %vm1208, %v1272, 0.0
        %v1337 = vsel %vm1209, %v1273, 0.0
        %v1338 = vsel %vm1210, %v1274, 0.0
        %v1339 = vsel %vm1211, %v1275, 0.0
        %v1340 = vsel %vm1212, %v1276, 0.0
        %v1341 = vsel %vm1213, %v1277, 0.0
        %v1342 = vsel %vm1214, %v1278, 0.0
        %v1343 = vsel %vm1215, %v1279, 0.0
        %v1344 = vsel %vm1216, %v1280, 0.0
        %v1345 = vsel %vm1217, %v1281, 0.0
        %v1346 = vsel %vm1218, %v1282, 0.0
        %v1347 = vsel %vm1219, %v1283, 0.0
        %v1348 = vsel %vm1220, %v1284, 0.0
        %v1349 = vsel %vm1221, %v1285, 0.0
        %v1350 = vsel %vm1222, %v1286, 0.0
        %v1351 = vsel %vm1223, %v1287, 0.0
        %v1352 = vsel %vm1224, %v1288, 0.0
        %v1353 = vsel %vm1225, %v1289, 0.0
        %v1354 = vsel %vm1226, %v1290, 0.0
        %v1355 = vsel %vm1227, %v1291, 0.0
        %v1356 = vsel %vm1228, %v1292, 0.0
        %v1357 = vsel %vm1229, %v1293, 0.0
        %v1358 = vsel %vm1230, %v1294, 0.0
        %v1359 = vsel %vm1231, %v1295, 0.0
        %v1360 = vsel %vm1232, %v1296, 0.0
        %v1361 = vsel %vm1233, %v1297, 0.0
        %v1362 = vsel %vm1234, %v1298, 0.0
        %v1363 = vsel %vm1235, %v1299, 0.0
        %v1364 = vsel %vm1236, %v1300, 0.0
        %v1365 = vsel %vm1237, %v1301, 0.0
        %v1366 = vsel %vm1238, %v1302, 0.0
        %v1367 = vld [vmem:[#allocation2] sm:$0xff]
        %v1368 = vld [vmem:[#allocation2 + $0x8] sm:$0xff]
        %v1369 = vld [vmem:[#allocation2 + $0x10] sm:$0xff]
        %v1370 = vld [vmem:[#allocation2 + $0x18] sm:$0xff]
        %v1371 = vld [vmem:[#allocation2 + $0x20] sm:$0xff]
        %v1372 = vld [vmem:[#allocation2 + $0x28] sm:$0xff]
        %v1373 = vld [vmem:[#allocation2 + $0x30] sm:$0xff]
        %v1374 = vld [vmem:[#allocation2 + $0x38] sm:$0xff]
        %v1375 = vld [vmem:[#allocation2 + $0x40] sm:$0xff]
        %v1376 = vld [vmem:[#allocation2 + $0x48] sm:$0xff]
        %v1377 = vld [vmem:[#allocation2 + $0x50] sm:$0xff]
        %v1378 = vld [vmem:[#allocation2 + $0x58] sm:$0xff]
        %v1379 = vld [vmem:[#allocation2 + $0x60] sm:$0xff]
        %v1380 = vld [vmem:[#allocation2 + $0x68] sm:$0xff]
        %v1381 = vld [vmem:[#allocation2 + $0x70] sm:$0xff]
        %v1382 = vld [vmem:[#allocation2 + $0x78] sm:$0xff]
        %v1383 = vld [vmem:[#allocation2 + $0x80] sm:$0xff]
        %v1384 = vld [vmem:[#allocation2 + $0x88] sm:$0xff]
        %v1385 = vld [vmem:[#allocation2 + $0x90] sm:$0xff]
        %v1386 = vld [vmem:[#allocation2 + $0x98] sm:$0xff]
        %v1387 = vld [vmem:[#allocation2 + $0xa0] sm:$0xff]
        %v1388 = vld [vmem:[#allocation2 + $0xa8] sm:$0xff]
        %v1389 = vld [vmem:[#allocation2 + $0xb0] sm:$0xff]
        %v1390 = vld [vmem:[#allocation2 + $0xb8] sm:$0xff]
        %v1391 = vld [vmem:[#allocation2 + $0xc0] sm:$0xff]
        %v1392 = vld [vmem:[#allocation2 + $0xc8] sm:$0xff]
        %v1393 = vld [vmem:[#allocation2 + $0xd0] sm:$0xff]
        %v1394 = vld [vmem:[#allocation2 + $0xd8] sm:$0xff]
        %v1395 = vld [vmem:[#allocation2 + $0xe0] sm:$0xff]
        %v1396 = vld [vmem:[#allocation2 + $0xe8] sm:$0xff]
        %v1397 = vld [vmem:[#allocation2 + $0xf0] sm:$0xff]
        %v1398 = vld [vmem:[#allocation2 + $0xf8] sm:$0xff]
        %v1399 = vpack.c.bf16 %v1307, %v1303
        %v1400 = vpack.c.bf16 %v1308, %v1304
        %v1401 = vpack.c.bf16 %v1309, %v1305
        %v1402 = vpack.c.bf16 %v1310, %v1306
        %v1403 = vpack.c.bf16 %v1315, %v1311
        %v1404 = vpack.c.bf16 %v1316, %v1312
        %v1405 = vpack.c.bf16 %v1317, %v1313
        %v1406 = vpack.c.bf16 %v1318, %v1314
        %v1407 = vpack.c.bf16 %v1323, %v1319
        %v1408 = vpack.c.bf16 %v1324, %v1320
        %v1409 = vpack.c.bf16 %v1325, %v1321
        %v1410 = vpack.c.bf16 %v1326, %v1322
        %v1411 = vpack.c.bf16 %v1331, %v1327
        %v1412 = vpack.c.bf16 %v1332, %v1328
        %v1413 = vpack.c.bf16 %v1333, %v1329
        %v1414 = vpack.c.bf16 %v1334, %v1330
        %v1415 = vpack.c.bf16 %v1339, %v1335
        %v1416 = vpack.c.bf16 %v1340, %v1336
        %v1417 = vpack.c.bf16 %v1341, %v1337
        %v1418 = vpack.c.bf16 %v1342, %v1338
        %v1419 = vpack.c.bf16 %v1347, %v1343
        %v1420 = vpack.c.bf16 %v1348, %v1344
        %v1421 = vpack.c.bf16 %v1349, %v1345
        %v1422 = vpack.c.bf16 %v1350, %v1346
        %v1423 = vpack.c.bf16 %v1355, %v1351
        %v1424 = vpack.c.bf16 %v1356, %v1352
        %v1425 = vpack.c.bf16 %v1357, %v1353
        %v1426 = vpack.c.bf16 %v1358, %v1354
        %v1427 = vpack.c.bf16 %v1363, %v1359
        %v1428 = vpack.c.bf16 %v1364, %v1360
        %v1429 = vpack.c.bf16 %v1365, %v1361
        %v1430 = vpack.c.bf16 %v1366, %v1362
        %v1431 = vld [vmem:[%s321] sm:$0xff]
        %v1432 = vld [vmem:[%s321 + $0x8] sm:$0xff]
        %v1433 = vld [vmem:[%s321 + $0x10] sm:$0xff]
        %v1434 = vld [vmem:[%s321 + $0x18] sm:$0xff]
        %v1435 = vld [vmem:[%s321 + $0x20] sm:$0xff]
        %v1436 = vld [vmem:[%s321 + $0x28] sm:$0xff]
        %v1437 = vld [vmem:[%s321 + $0x30] sm:$0xff]
        %v1438 = vld [vmem:[%s321 + $0x38] sm:$0xff]
        %v1439 = vld [vmem:[%s321 + $0x40] sm:$0xff]
        %v1440 = vld [vmem:[%s321 + $0x48] sm:$0xff]
        %v1441 = vld [vmem:[%s321 + $0x50] sm:$0xff]
        %v1442 = vld [vmem:[%s321 + $0x58] sm:$0xff]
        %v1443 = vld [vmem:[%s321 + $0x60] sm:$0xff]
        %v1444 = vld [vmem:[%s321 + $0x68] sm:$0xff]
        %v1445 = vld [vmem:[%s321 + $0x70] sm:$0xff]
        %v1446 = vld [vmem:[%s321 + $0x78] sm:$0xff]
        %v1447 = vld [vmem:[%s321 + $0x80] sm:$0xff]
        %v1448 = vld [vmem:[%s321 + $0x88] sm:$0xff]
        %v1449 = vld [vmem:[%s321 + $0x90] sm:$0xff]
        %v1450 = vld [vmem:[%s321 + $0x98] sm:$0xff]
        %v1451 = vld [vmem:[%s321 + $0xa0] sm:$0xff]
        %v1452 = vld [vmem:[%s321 + $0xa8] sm:$0xff]
        %v1453 = vld [vmem:[%s321 + $0xb0] sm:$0xff]
        %v1454 = vld [vmem:[%s321 + $0xb8] sm:$0xff]
        %v1455 = vld [vmem:[%s321 + $0xc0] sm:$0xff]
        %v1456 = vld [vmem:[%s321 + $0xc8] sm:$0xff]
        %v1457 = vld [vmem:[%s321 + $0xd0] sm:$0xff]
        %v1458 = vld [vmem:[%s321 + $0xd8] sm:$0xff]
        %v1459 = vld [vmem:[%s321 + $0xe0] sm:$0xff]
        %v1460 = vld [vmem:[%s321 + $0xe8] sm:$0xff]
        %v1461 = vld [vmem:[%s321 + $0xf0] sm:$0xff]
        %v1462 = vld [vmem:[%s321 + $0xf8] sm:$0xff]
        %v1463 = vld [vmem:[%s321 + $0x100] sm:$0xff]
        %v1464 = vld [vmem:[%s321 + $0x108] sm:$0xff]
        %v1465 = vld [vmem:[%s321 + $0x110] sm:$0xff]
        %v1466 = vld [vmem:[%s321 + $0x118] sm:$0xff]
        %v1467 = vld [vmem:[%s321 + $0x120] sm:$0xff]
        %v1468 = vld [vmem:[%s321 + $0x128] sm:$0xff]
        %v1469 = vld [vmem:[%s321 + $0x130] sm:$0xff]
        %v1470 = vld [vmem:[%s321 + $0x138] sm:$0xff]
        %v1471 = vld [vmem:[%s321 + $0x140] sm:$0xff]
        %v1472 = vld [vmem:[%s321 + $0x148] sm:$0xff]
        %v1473 = vld [vmem:[%s321 + $0x150] sm:$0xff]
        %v1474 = vld [vmem:[%s321 + $0x158] sm:$0xff]
        %v1475 = vld [vmem:[%s321 + $0x160] sm:$0xff]
        %v1476 = vld [vmem:[%s321 + $0x168] sm:$0xff]
        %v1477 = vld [vmem:[%s321 + $0x170] sm:$0xff]
        %v1478 = vld [vmem:[%s321 + $0x178] sm:$0xff]
        %v1479 = vld [vmem:[%s321 + $0x180] sm:$0xff]
        %v1480 = vld [vmem:[%s321 + $0x188] sm:$0xff]
        %v1481 = vld [vmem:[%s321 + $0x190] sm:$0xff]
        %v1482 = vld [vmem:[%s321 + $0x198] sm:$0xff]
        %v1483 = vld [vmem:[%s321 + $0x1a0] sm:$0xff]
        %v1484 = vld [vmem:[%s321 + $0x1a8] sm:$0xff]
        %v1485 = vld [vmem:[%s321 + $0x1b0] sm:$0xff]
        %v1486 = vld [vmem:[%s321 + $0x1b8] sm:$0xff]
        %v1487 = vld [vmem:[%s321 + $0x1c0] sm:$0xff]
        %v1488 = vld [vmem:[%s321 + $0x1c8] sm:$0xff]
        %v1489 = vld [vmem:[%s321 + $0x1d0] sm:$0xff]
        %v1490 = vld [vmem:[%s321 + $0x1d8] sm:$0xff]
        %v1491 = vld [vmem:[%s321 + $0x1e0] sm:$0xff]
        %v1492 = vld [vmem:[%s321 + $0x1e8] sm:$0xff]
        %v1493 = vld [vmem:[%s321 + $0x1f0] sm:$0xff]
        %v1494 = vld [vmem:[%s321 + $0x1f8] sm:$0xff]
        %v1559 = vunpack.c.l.b16 %v1431
        %v1560 = vunpack.c.h.b16 %v1431
        %v1561 = vunpack.c.l.b16 %v1432
        %v1562 = vunpack.c.h.b16 %v1432
        %v1563 = vunpack.c.l.b16 %v1433
        %v1564 = vunpack.c.h.b16 %v1433
        %v1565 = vunpack.c.l.b16 %v1434
        %v1566 = vunpack.c.h.b16 %v1434
        %v1567 = vunpack.c.l.b16 %v1435
        %v1568 = vunpack.c.h.b16 %v1435
        %v1569 = vunpack.c.l.b16 %v1436
        %v1570 = vunpack.c.h.b16 %v1436
        %v1571 = vunpack.c.l.b16 %v1437
        %v1572 = vunpack.c.h.b16 %v1437
        %v1573 = vunpack.c.l.b16 %v1438
        %v1574 = vunpack.c.h.b16 %v1438
        %v1575 = vunpack.c.l.b16 %v1439
        %v1576 = vunpack.c.h.b16 %v1439
        %v1577 = vunpack.c.l.b16 %v1440
        %v1578 = vunpack.c.h.b16 %v1440
        %v1579 = vunpack.c.l.b16 %v1441
        %v1580 = vunpack.c.h.b16 %v1441
        %v1581 = vunpack.c.l.b16 %v1442
        %v1582 = vunpack.c.h.b16 %v1442
        %v1583 = vunpack.c.l.b16 %v1443
        %v1584 = vunpack.c.h.b16 %v1443
        %v1585 = vunpack.c.l.b16 %v1444
        %v1586 = vunpack.c.h.b16 %v1444
        %v1587 = vunpack.c.l.b16 %v1445
        %v1588 = vunpack.c.h.b16 %v1445
        %v1589 = vunpack.c.l.b16 %v1446
        %v1590 = vunpack.c.h.b16 %v1446
        %v1591 = vunpack.c.l.b16 %v1447
        %v1592 = vunpack.c.h.b16 %v1447
        %v1593 = vunpack.c.l.b16 %v1448
        %v1594 = vunpack.c.h.b16 %v1448
        %v1595 = vunpack.c.l.b16 %v1449
        %v1596 = vunpack.c.h.b16 %v1449
        %v1597 = vunpack.c.l.b16 %v1450
        %v1598 = vunpack.c.h.b16 %v1450
        %v1599 = vunpack.c.l.b16 %v1451
        %v1600 = vunpack.c.h.b16 %v1451
        %v1601 = vunpack.c.l.b16 %v1452
        %v1602 = vunpack.c.h.b16 %v1452
        %v1603 = vunpack.c.l.b16 %v1453
        %v1604 = vunpack.c.h.b16 %v1453
        %v1605 = vunpack.c.l.b16 %v1454
        %v1606 = vunpack.c.h.b16 %v1454
        %v1607 = vunpack.c.l.b16 %v1455
        %v1608 = vunpack.c.h.b16 %v1455
        %v1609 = vunpack.c.l.b16 %v1456
        %v1610 = vunpack.c.h.b16 %v1456
        %v1611 = vunpack.c.l.b16 %v1457
        %v1612 = vunpack.c.h.b16 %v1457
        %v1613 = vunpack.c.l.b16 %v1458
        %v1614 = vunpack.c.h.b16 %v1458
        %v1615 = vunpack.c.l.b16 %v1459
        %v1616 = vunpack.c.h.b16 %v1459
        %v1617 = vunpack.c.l.b16 %v1460
        %v1618 = vunpack.c.h.b16 %v1460
        %v1619 = vunpack.c.l.b16 %v1461
        %v1620 = vunpack.c.h.b16 %v1461
        %v1621 = vunpack.c.l.b16 %v1462
        %v1622 = vunpack.c.h.b16 %v1462
        %v1623 = vunpack.c.l.b16 %v1463
        %v1624 = vunpack.c.h.b16 %v1463
        %v1625 = vunpack.c.l.b16 %v1464
        %v1626 = vunpack.c.h.b16 %v1464
        %v1627 = vunpack.c.l.b16 %v1465
        %v1628 = vunpack.c.h.b16 %v1465
        %v1629 = vunpack.c.l.b16 %v1466
        %v1630 = vunpack.c.h.b16 %v1466
        %v1631 = vunpack.c.l.b16 %v1467
        %v1632 = vunpack.c.h.b16 %v1467
        %v1633 = vunpack.c.l.b16 %v1468
        %v1634 = vunpack.c.h.b16 %v1468
        %v1635 = vunpack.c.l.b16 %v1469
        %v1636 = vunpack.c.h.b16 %v1469
        %v1637 = vunpack.c.l.b16 %v1470
        %v1638 = vunpack.c.h.b16 %v1470
        %v1639 = vunpack.c.l.b16 %v1471
        %v1640 = vunpack.c.h.b16 %v1471
        %v1641 = vunpack.c.l.b16 %v1472
        %v1642 = vunpack.c.h.b16 %v1472
        %v1643 = vunpack.c.l.b16 %v1473
        %v1644 = vunpack.c.h.b16 %v1473
        %v1645 = vunpack.c.l.b16 %v1474
        %v1646 = vunpack.c.h.b16 %v1474
        %v1647 = vunpack.c.l.b16 %v1475
        %v1648 = vunpack.c.h.b16 %v1475
        %v1649 = vunpack.c.l.b16 %v1476
        %v1650 = vunpack.c.h.b16 %v1476
        %v1651 = vunpack.c.l.b16 %v1477
        %v1652 = vunpack.c.h.b16 %v1477
        %v1653 = vunpack.c.l.b16 %v1478
        %v1654 = vunpack.c.h.b16 %v1478
        %v1655 = vunpack.c.l.b16 %v1479
        %v1656 = vunpack.c.h.b16 %v1479
        %v1657 = vunpack.c.l.b16 %v1480
        %v1658 = vunpack.c.h.b16 %v1480
        %v1659 = vunpack.c.l.b16 %v1481
        %v1660 = vunpack.c.h.b16 %v1481
        %v1661 = vunpack.c.l.b16 %v1482
        %v1662 = vunpack.c.h.b16 %v1482
        %v1663 = vunpack.c.l.b16 %v1483
        %v1664 = vunpack.c.h.b16 %v1483
        %v1665 = vunpack.c.l.b16 %v1484
        %v1666 = vunpack.c.h.b16 %v1484
        %v1667 = vunpack.c.l.b16 %v1485
        %v1668 = vunpack.c.h.b16 %v1485
        %v1669 = vunpack.c.l.b16 %v1486
        %v1670 = vunpack.c.h.b16 %v1486
        %v1671 = vunpack.c.l.b16 %v1487
        %v1672 = vunpack.c.h.b16 %v1487
        %v1673 = vunpack.c.l.b16 %v1488
        %v1674 = vunpack.c.h.b16 %v1488
        %v1675 = vunpack.c.l.b16 %v1489
        %v1676 = vunpack.c.h.b16 %v1489
        %v1677 = vunpack.c.l.b16 %v1490
        %v1678 = vunpack.c.h.b16 %v1490
        %v1679 = vunpack.c.l.b16 %v1491
        %v1680 = vunpack.c.h.b16 %v1491
        %v1681 = vunpack.c.l.b16 %v1492
        %v1682 = vunpack.c.h.b16 %v1492
        %v1683 = vunpack.c.l.b16 %v1493
        %v1684 = vunpack.c.h.b16 %v1493
        %v1685 = vunpack.c.l.b16 %v1494
        %v1686 = vunpack.c.h.b16 %v1494
        %v1687 = vpack.c.b16 %v1561, %v1559
        %v1688 = vpack.c.b16 %v1562, %v1560
        %v1689 = vpack.c.b16 %v1565, %v1563
        %v1690 = vpack.c.b16 %v1566, %v1564
        %v1691 = vpack.c.b16 %v1569, %v1567
        %v1692 = vpack.c.b16 %v1570, %v1568
        %v1693 = vpack.c.b16 %v1573, %v1571
        %v1694 = vpack.c.b16 %v1574, %v1572
        %v1695 = vpack.c.b16 %v1577, %v1575
        %v1696 = vpack.c.b16 %v1578, %v1576
        %v1697 = vpack.c.b16 %v1581, %v1579
        %v1698 = vpack.c.b16 %v1582, %v1580
        %v1699 = vpack.c.b16 %v1585, %v1583
        %v1700 = vpack.c.b16 %v1586, %v1584
        %v1701 = vpack.c.b16 %v1589, %v1587
        %v1702 = vpack.c.b16 %v1590, %v1588
        %v1703 = vpack.c.b16 %v1593, %v1591
        %v1704 = vpack.c.b16 %v1594, %v1592
        %v1705 = vpack.c.b16 %v1597, %v1595
        %v1706 = vpack.c.b16 %v1598, %v1596
        %v1707 = vpack.c.b16 %v1601, %v1599
        %v1708 = vpack.c.b16 %v1602, %v1600
        %v1709 = vpack.c.b16 %v1605, %v1603
        %v1710 = vpack.c.b16 %v1606, %v1604
        %v1711 = vpack.c.b16 %v1609, %v1607
        %v1712 = vpack.c.b16 %v1610, %v1608
        %v1713 = vpack.c.b16 %v1613, %v1611
        %v1714 = vpack.c.b16 %v1614, %v1612
        %v1715 = vpack.c.b16 %v1617, %v1615
        %v1716 = vpack.c.b16 %v1618, %v1616
        %v1717 = vpack.c.b16 %v1621, %v1619
        %v1718 = vpack.c.b16 %v1622, %v1620
        %v1719 = vpack.c.b16 %v1625, %v1623
        %v1720 = vpack.c.b16 %v1626, %v1624
        %v1721 = vpack.c.b16 %v1629, %v1627
        %v1722 = vpack.c.b16 %v1630, %v1628
        %v1723 = vpack.c.b16 %v1633, %v1631
        %v1724 = vpack.c.b16 %v1634, %v1632
        %v1725 = vpack.c.b16 %v1637, %v1635
        %v1726 = vpack.c.b16 %v1638, %v1636
        %v1727 = vpack.c.b16 %v1641, %v1639
        %v1728 = vpack.c.b16 %v1642, %v1640
        %v1729 = vpack.c.b16 %v1645, %v1643
        %v1730 = vpack.c.b16 %v1646, %v1644
        %v1731 = vpack.c.b16 %v1649, %v1647
        %v1732 = vpack.c.b16 %v1650, %v1648
        %v1733 = vpack.c.b16 %v1653, %v1651
        %v1734 = vpack.c.b16 %v1654, %v1652
        %v1735 = vpack.c.b16 %v1657, %v1655
        %v1736 = vpack.c.b16 %v1658, %v1656
        %v1737 = vpack.c.b16 %v1661, %v1659
        %v1738 = vpack.c.b16 %v1662, %v1660
        %v1739 = vpack.c.b16 %v1665, %v1663
        %v1740 = vpack.c.b16 %v1666, %v1664
        %v1741 = vpack.c.b16 %v1669, %v1667
        %v1742 = vpack.c.b16 %v1670, %v1668
        %v1743 = vpack.c.b16 %v1673, %v1671
        %v1744 = vpack.c.b16 %v1674, %v1672
        %v1745 = vpack.c.b16 %v1677, %v1675
        %v1746 = vpack.c.b16 %v1678, %v1676
        %v1747 = vpack.c.b16 %v1681, %v1679
        %v1748 = vpack.c.b16 %v1682, %v1680
        %v1749 = vpack.c.b16 %v1685, %v1683
        %v1750 = vpack.c.b16 %v1686, %v1684
        %1815 = vmatprep.subr.bf16.mxu0 %v1702
        %1816 = vmatpush1.bf16.msra.mxu0 %v1701
        %1817 = vmatprep.subr.bf16.mxu0 %v1700
        %1818 = vmatpush1.bf16.msra.mxu0 %v1699
        %1819 = vmatprep.subr.bf16.mxu0 %v1698
        %1820 = vmatpush1.bf16.msra.mxu0 %v1697
        %1821 = vmatprep.subr.bf16.mxu0 %v1696
        %1822 = vmatpush1.bf16.msra.mxu0 %v1695
        %1823 = vmatprep.subr.bf16.mxu0 %v1694
        %1824 = vmatpush1.bf16.msra.mxu0 %v1693
        %1825 = vmatprep.subr.bf16.mxu0 %v1692
        %1826 = vmatpush1.bf16.msra.mxu0 %v1691
        %1827 = vmatprep.subr.bf16.mxu0 %v1690
        %1828 = vmatpush1.bf16.msra.mxu0 %v1689
        %1829 = vmatprep.subr.bf16.mxu0 %v1688
        %1830 = vmatpush1.bf16.msra.mxu0 %v1687
        %1831 = vmatprep.subr.bf16.mxu0 %v1718
        %1832 = vmatpush2.bf16.msra.mxu0 %v1717
        %1833 = vmatprep.subr.bf16.mxu0 %v1716
        %1834 = vmatpush2.bf16.msra.mxu0 %v1715
        %1835 = vmatprep.subr.bf16.mxu0 %v1714
        %1836 = vmatpush2.bf16.msra.mxu0 %v1713
        %1837 = vmatprep.subr.bf16.mxu0 %v1712
        %1838 = vmatpush2.bf16.msra.mxu0 %v1711
        %1839 = vmatprep.subr.bf16.mxu0 %v1710
        %1840 = vmatpush2.bf16.msra.mxu0 %v1709
        %1841 = vmatprep.subr.bf16.mxu0 %v1708
        %1842 = vmatpush2.bf16.msra.mxu0 %v1707
        %1843 = vmatprep.subr.bf16.mxu0 %v1706
        %1844 = vmatpush2.bf16.msra.mxu0 %v1705
        %1845 = vmatprep.subr.bf16.mxu0 %v1704
        %1846 = vmatpush2.bf16.msra.mxu0 %v1703
        %1847 = vmatprep.mubr.bf16.mxu0 %v1400
        %1848 = vmatmul.mubr.bf16.gmra.mxu0 %v1399
        %v1849 = vpop.f32.mrf.mxu0
        %v1850 = vadd.f32 0.0, %v1849
        %v1851 = vpop.f32.mrf.mxu0
        %v1852 = vadd.f32 0.0, %v1851
        %v1853 = vpop.f32.mrf.mxu0
        %v1854 = vadd.f32 0.0, %v1853
        %v1855 = vpop.f32.mrf.mxu0
        %v1856 = vadd.f32 0.0, %v1855
        %1857 = vmatprep.mubr.bf16.mxu0 %v1404
        %1858 = vmatmul.mubr.bf16.gmra.mxu0 %v1403
        %v1859 = vpop.f32.mrf.mxu0
        %v1860 = vadd.f32 0.0, %v1859
        %v1861 = vpop.f32.mrf.mxu0
        %v1862 = vadd.f32 0.0, %v1861
        %v1863 = vpop.f32.mrf.mxu0
        %v1864 = vadd.f32 0.0, %v1863
        %v1865 = vpop.f32.mrf.mxu0
        %v1866 = vadd.f32 0.0, %v1865
        %1867 = vmatprep.mubr.bf16.mxu0 %v1408
        %1868 = vmatmul.mubr.bf16.gmra.mxu0 %v1407
        %v1869 = vpop.f32.mrf.mxu0
        %v1870 = vadd.f32 0.0, %v1869
        %v1871 = vpop.f32.mrf.mxu0
        %v1872 = vadd.f32 0.0, %v1871
        %v1873 = vpop.f32.mrf.mxu0
        %v1874 = vadd.f32 0.0, %v1873
        %v1875 = vpop.f32.mrf.mxu0
        %v1876 = vadd.f32 0.0, %v1875
        %1877 = vmatprep.mubr.bf16.mxu0 %v1412
        %1878 = vmatmul.mubr.bf16.gmra.mxu0 %v1411
        %v1879 = vpop.f32.mrf.mxu0
        %v1880 = vadd.f32 0.0, %v1879
        %v1881 = vpop.f32.mrf.mxu0
        %v1882 = vadd.f32 0.0, %v1881
        %v1883 = vpop.f32.mrf.mxu0
        %v1884 = vadd.f32 0.0, %v1883
        %v1885 = vpop.f32.mrf.mxu0
        %v1886 = vadd.f32 0.0, %v1885
        %1887 = vmatprep.mubr.bf16.mxu0 %v1416
        %1888 = vmatmul.mubr.bf16.gmra.mxu0 %v1415
        %v1889 = vpop.f32.mrf.mxu0
        %v1890 = vadd.f32 0.0, %v1889
        %v1891 = vpop.f32.mrf.mxu0
        %v1892 = vadd.f32 0.0, %v1891
        %v1893 = vpop.f32.mrf.mxu0
        %v1894 = vadd.f32 0.0, %v1893
        %v1895 = vpop.f32.mrf.mxu0
        %v1896 = vadd.f32 0.0, %v1895
        %1897 = vmatprep.mubr.bf16.mxu0 %v1420
        %1898 = vmatmul.mubr.bf16.gmra.mxu0 %v1419
        %v1899 = vpop.f32.mrf.mxu0
        %v1900 = vadd.f32 0.0, %v1899
        %v1901 = vpop.f32.mrf.mxu0
        %v1902 = vadd.f32 0.0, %v1901
        %v1903 = vpop.f32.mrf.mxu0
        %v1904 = vadd.f32 0.0, %v1903
        %v1905 = vpop.f32.mrf.mxu0
        %v1906 = vadd.f32 0.0, %v1905
        %1907 = vmatprep.mubr.bf16.mxu0 %v1424
        %1908 = vmatmul.mubr.bf16.gmra.mxu0 %v1423
        %v1909 = vpop.f32.mrf.mxu0
        %v1910 = vadd.f32 0.0, %v1909
        %v1911 = vpop.f32.mrf.mxu0
        %v1912 = vadd.f32 0.0, %v1911
        %v1913 = vpop.f32.mrf.mxu0
        %v1914 = vadd.f32 0.0, %v1913
        %v1915 = vpop.f32.mrf.mxu0
        %v1916 = vadd.f32 0.0, %v1915
        %1917 = vmatprep.mubr.bf16.mxu0 %v1428
        %1918 = vmatmul.mubr.bf16.gmra.mxu0 %v1427
        %v1919 = vpop.f32.mrf.mxu0
        %v1920 = vadd.f32 0.0, %v1919
        %v1921 = vpop.f32.mrf.mxu0
        %v1922 = vadd.f32 0.0, %v1921
        %v1923 = vpop.f32.mrf.mxu0
        %v1924 = vadd.f32 0.0, %v1923
        %v1925 = vpop.f32.mrf.mxu0
        %v1926 = vadd.f32 0.0, %v1925
        %1927 = vdwg.mxu0
        %1928 = vmatprep.subr.bf16.mxu0 %v1734
        %1929 = vmatpush1.bf16.msra.mxu0 %v1733
        %1930 = vmatprep.subr.bf16.mxu0 %v1732
        %1931 = vmatpush1.bf16.msra.mxu0 %v1731
        %1932 = vmatprep.subr.bf16.mxu0 %v1730
        %1933 = vmatpush1.bf16.msra.mxu0 %v1729
        %1934 = vmatprep.subr.bf16.mxu0 %v1728
        %1935 = vmatpush1.bf16.msra.mxu0 %v1727
        %1936 = vmatprep.subr.bf16.mxu0 %v1726
        %1937 = vmatpush1.bf16.msra.mxu0 %v1725
        %1938 = vmatprep.subr.bf16.mxu0 %v1724
        %1939 = vmatpush1.bf16.msra.mxu0 %v1723
        %1940 = vmatprep.subr.bf16.mxu0 %v1722
        %1941 = vmatpush1.bf16.msra.mxu0 %v1721
        %1942 = vmatprep.subr.bf16.mxu0 %v1720
        %1943 = vmatpush1.bf16.msra.mxu0 %v1719
        %1944 = vmatprep.subr.bf16.mxu0 %v1750
        %1945 = vmatpush2.bf16.msra.mxu0 %v1749
        %1946 = vmatprep.subr.bf16.mxu0 %v1748
        %1947 = vmatpush2.bf16.msra.mxu0 %v1747
        %1948 = vmatprep.subr.bf16.mxu0 %v1746
        %1949 = vmatpush2.bf16.msra.mxu0 %v1745
        %1950 = vmatprep.subr.bf16.mxu0 %v1744
        %1951 = vmatpush2.bf16.msra.mxu0 %v1743
        %1952 = vmatprep.subr.bf16.mxu0 %v1742
        %1953 = vmatpush2.bf16.msra.mxu0 %v1741
        %1954 = vmatprep.subr.bf16.mxu0 %v1740
        %1955 = vmatpush2.bf16.msra.mxu0 %v1739
        %1956 = vmatprep.subr.bf16.mxu0 %v1738
        %1957 = vmatpush2.bf16.msra.mxu0 %v1737
        %1958 = vmatprep.subr.bf16.mxu0 %v1736
        %1959 = vmatpush2.bf16.msra.mxu0 %v1735
        %1960 = vmatprep.mubr.bf16.mxu0 %v1402
        %1961 = vmatmul.mubr.bf16.gmra.mxu0 %v1401
        %v1962 = vpop.f32.mrf.mxu0
        %v1963 = vadd.f32 %v1850, %v1962
        %v1964 = vpop.f32.mrf.mxu0
        %v1965 = vadd.f32 %v1852, %v1964
        %v1966 = vpop.f32.mrf.mxu0
        %v1967 = vadd.f32 %v1854, %v1966
        %v1968 = vpop.f32.mrf.mxu0
        %v1969 = vadd.f32 %v1856, %v1968
        %1970 = vmatprep.mubr.bf16.mxu0 %v1406
        %1971 = vmatmul.mubr.bf16.gmra.mxu0 %v1405
        %v1972 = vpop.f32.mrf.mxu0
        %v1973 = vadd.f32 %v1860, %v1972
        %v1974 = vpop.f32.mrf.mxu0
        %v1975 = vadd.f32 %v1862, %v1974
        %v1976 = vpop.f32.mrf.mxu0
        %v1977 = vadd.f32 %v1864, %v1976
        %v1978 = vpop.f32.mrf.mxu0
        %v1979 = vadd.f32 %v1866, %v1978
        %1980 = vmatprep.mubr.bf16.mxu0 %v1410
        %1981 = vmatmul.mubr.bf16.gmra.mxu0 %v1409
        %v1982 = vpop.f32.mrf.mxu0
        %v1983 = vadd.f32 %v1870, %v1982
        %v1984 = vpop.f32.mrf.mxu0
        %v1985 = vadd.f32 %v1872, %v1984
        %v1986 = vpop.f32.mrf.mxu0
        %v1987 = vadd.f32 %v1874, %v1986
        %v1988 = vpop.f32.mrf.mxu0
        %v1989 = vadd.f32 %v1876, %v1988
        %1990 = vmatprep.mubr.bf16.mxu0 %v1414
        %1991 = vmatmul.mubr.bf16.gmra.mxu0 %v1413
        %v1992 = vpop.f32.mrf.mxu0
        %v1993 = vadd.f32 %v1880, %v1992
        %v1994 = vpop.f32.mrf.mxu0
        %v1995 = vadd.f32 %v1882, %v1994
        %v1996 = vpop.f32.mrf.mxu0
        %v1997 = vadd.f32 %v1884, %v1996
        %v1998 = vpop.f32.mrf.mxu0
        %v1999 = vadd.f32 %v1886, %v1998
        %2000 = vmatprep.mubr.bf16.mxu0 %v1418
        %2001 = vmatmul.mubr.bf16.gmra.mxu0 %v1417
        %v2002 = vpop.f32.mrf.mxu0
        %v2003 = vadd.f32 %v1890, %v2002
        %v2004 = vpop.f32.mrf.mxu0
        %v2005 = vadd.f32 %v1892, %v2004
        %v2006 = vpop.f32.mrf.mxu0
        %v2007 = vadd.f32 %v1894, %v2006
        %v2008 = vpop.f32.mrf.mxu0
        %v2009 = vadd.f32 %v1896, %v2008
        %2010 = vmatprep.mubr.bf16.mxu0 %v1422
        %2011 = vmatmul.mubr.bf16.gmra.mxu0 %v1421
        %v2012 = vpop.f32.mrf.mxu0
        %v2013 = vadd.f32 %v1900, %v2012
        %v2014 = vpop.f32.mrf.mxu0
        %v2015 = vadd.f32 %v1902, %v2014
        %v2016 = vpop.f32.mrf.mxu0
        %v2017 = vadd.f32 %v1904, %v2016
        %v2018 = vpop.f32.mrf.mxu0
        %v2019 = vadd.f32 %v1906, %v2018
        %2020 = vmatprep.mubr.bf16.mxu0 %v1426
        %2021 = vmatmul.mubr.bf16.gmra.mxu0 %v1425
        %v2022 = vpop.f32.mrf.mxu0
        %v2023 = vadd.f32 %v1910, %v2022
        %v2024 = vpop.f32.mrf.mxu0
        %v2025 = vadd.f32 %v1912, %v2024
        %v2026 = vpop.f32.mrf.mxu0
        %v2027 = vadd.f32 %v1914, %v2026
        %v2028 = vpop.f32.mrf.mxu0
        %v2029 = vadd.f32 %v1916, %v2028
        %2030 = vmatprep.mubr.bf16.mxu0 %v1430
        %2031 = vmatmul.mubr.bf16.gmra.mxu0 %v1429
        %v2032 = vpop.f32.mrf.mxu0
        %v2033 = vadd.f32 %v1920, %v2032
        %v2034 = vpop.f32.mrf.mxu0
        %v2035 = vadd.f32 %v1922, %v2034
        %v2036 = vpop.f32.mrf.mxu0
        %v2037 = vadd.f32 %v1924, %v2036
        %v2038 = vpop.f32.mrf.mxu0
        %v2039 = vadd.f32 %v1926, %v2038
        %2040 = vdwg.mxu0
        %v2041 = vadd.f32 %v1367, %v1963
        %v2042 = vadd.f32 %v1368, %v1965
        %v2043 = vadd.f32 %v1369, %v1967
        %v2044 = vadd.f32 %v1370, %v1969
        %v2045 = vadd.f32 %v1371, %v1973
        %v2046 = vadd.f32 %v1372, %v1975
        %v2047 = vadd.f32 %v1373, %v1977
        %v2048 = vadd.f32 %v1374, %v1979
        %v2049 = vadd.f32 %v1375, %v1983
        %v2050 = vadd.f32 %v1376, %v1985
        %v2051 = vadd.f32 %v1377, %v1987
        %v2052 = vadd.f32 %v1378, %v1989
        %v2053 = vadd.f32 %v1379, %v1993
        %v2054 = vadd.f32 %v1380, %v1995
        %v2055 = vadd.f32 %v1381, %v1997
        %v2056 = vadd.f32 %v1382, %v1999
        %v2057 = vadd.f32 %v1383, %v2003
        %v2058 = vadd.f32 %v1384, %v2005
        %v2059 = vadd.f32 %v1385, %v2007
        %v2060 = vadd.f32 %v1386, %v2009
        %v2061 = vadd.f32 %v1387, %v2013
        %v2062 = vadd.f32 %v1388, %v2015
        %v2063 = vadd.f32 %v1389, %v2017
        %v2064 = vadd.f32 %v1390, %v2019
        %v2065 = vadd.f32 %v1391, %v2023
        %v2066 = vadd.f32 %v1392, %v2025
        %v2067 = vadd.f32 %v1393, %v2027
        %v2068 = vadd.f32 %v1394, %v2029
        %v2069 = vadd.f32 %v1395, %v2033
        %v2070 = vadd.f32 %v1396, %v2035
        %v2071 = vadd.f32 %v1397, %v2037
        %v2072 = vadd.f32 %v1398, %v2039
        %2073 = vst [vmem:[#allocation2] sm:$0xff] %v2041
        %2074 = vst [vmem:[#allocation2 + $0x8] sm:$0xff] %v2042
        %2075 = vst [vmem:[#allocation2 + $0x10] sm:$0xff] %v2043
        %2076 = vst [vmem:[#allocation2 + $0x18] sm:$0xff] %v2044
        %2077 = vst [vmem:[#allocation2 + $0x20] sm:$0xff] %v2045
        %2078 = vst [vmem:[#allocation2 + $0x28] sm:$0xff] %v2046
        %2079 = vst [vmem:[#allocation2 + $0x30] sm:$0xff] %v2047
        %2080 = vst [vmem:[#allocation2 + $0x38] sm:$0xff] %v2048
        %2081 = vst [vmem:[#allocation2 + $0x40] sm:$0xff] %v2049
        %2082 = vst [vmem:[#allocation2 + $0x48] sm:$0xff] %v2050
        %2083 = vst [vmem:[#allocation2 + $0x50] sm:$0xff] %v2051
        %2084 = vst [vmem:[#allocation2 + $0x58] sm:$0xff] %v2052
        %2085 = vst [vmem:[#allocation2 + $0x60] sm:$0xff] %v2053
        %2086 = vst [vmem:[#allocation2 + $0x68] sm:$0xff] %v2054
        %2087 = vst [vmem:[#allocation2 + $0x70] sm:$0xff] %v2055
        %2088 = vst [vmem:[#allocation2 + $0x78] sm:$0xff] %v2056
        %2089 = vst [vmem:[#allocation2 + $0x80] sm:$0xff] %v2057
        %2090 = vst [vmem:[#allocation2 + $0x88] sm:$0xff] %v2058
        %2091 = vst [vmem:[#allocation2 + $0x90] sm:$0xff] %v2059
        %2092 = vst [vmem:[#allocation2 + $0x98] sm:$0xff] %v2060
        %2093 = vst [vmem:[#allocation2 + $0xa0] sm:$0xff] %v2061
        %2094 = vst [vmem:[#allocation2 + $0xa8] sm:$0xff] %v2062
        %2095 = vst [vmem:[#allocation2 + $0xb0] sm:$0xff] %v2063
        %2096 = vst [vmem:[#allocation2 + $0xb8] sm:$0xff] %v2064
        %2097 = vst [vmem:[#allocation2 + $0xc0] sm:$0xff] %v2065
        %2098 = vst [vmem:[#allocation2 + $0xc8] sm:$0xff] %v2066
        %2099 = vst [vmem:[#allocation2 + $0xd0] sm:$0xff] %v2067
        %2100 = vst [vmem:[#allocation2 + $0xd8] sm:$0xff] %v2068
        %2101 = vst [vmem:[#allocation2 + $0xe0] sm:$0xff] %v2069
        %2102 = vst [vmem:[#allocation2 + $0xe8] sm:$0xff] %v2070
        %2103 = vst [vmem:[#allocation2 + $0xf0] sm:$0xff] %v2071
        %2104 = vst [vmem:[#allocation2 + $0xf8] sm:$0xff] %v2072
        %p2105 = scmp.eq.s32.totalorder %s31, 1
        // Predicated region
        $region57: #{jumprelu_sae_forward.1} parent=43 // pred_check
          %p2106 = pneg %p2105
        $region58: #{jumprelu_sae_forward.1} parent=43 // pred_check_branch
          %2108 = sbr.rel (%p2106) target = $region60
        $region59: #{jumprelu_sae_forward.1} parent=43 // pred_region
          %v2109 = vld [vmem:[#allocation2] sm:$0xff]
          %v2110 = vld [vmem:[#allocation2 + $0x8] sm:$0xff]
          %v2111 = vld [vmem:[#allocation2 + $0x10] sm:$0xff]
          %v2112 = vld [vmem:[#allocation2 + $0x18] sm:$0xff]
          %v2113 = vld [vmem:[#allocation2 + $0x20] sm:$0xff]
          %v2114 = vld [vmem:[#allocation2 + $0x28] sm:$0xff]
          %v2115 = vld [vmem:[#allocation2 + $0x30] sm:$0xff]
          %v2116 = vld [vmem:[#allocation2 + $0x38] sm:$0xff]
          %v2117 = vld [vmem:[#allocation2 + $0x40] sm:$0xff]
          %v2118 = vld [vmem:[#allocation2 + $0x48] sm:$0xff]
          %v2119 = vld [vmem:[#allocation2 + $0x50] sm:$0xff]
          %v2120 = vld [vmem:[#allocation2 + $0x58] sm:$0xff]
          %v2121 = vld [vmem:[#allocation2 + $0x60] sm:$0xff]
          %v2122 = vld [vmem:[#allocation2 + $0x68] sm:$0xff]
          %v2123 = vld [vmem:[#allocation2 + $0x70] sm:$0xff]
          %v2124 = vld [vmem:[#allocation2 + $0x78] sm:$0xff]
          %v2125 = vld [vmem:[#allocation2 + $0x80] sm:$0xff]
          %v2126 = vld [vmem:[#allocation2 + $0x88] sm:$0xff]
          %v2127 = vld [vmem:[#allocation2 + $0x90] sm:$0xff]
          %v2128 = vld [vmem:[#allocation2 + $0x98] sm:$0xff]
          %v2129 = vld [vmem:[#allocation2 + $0xa0] sm:$0xff]
          %v2130 = vld [vmem:[#allocation2 + $0xa8] sm:$0xff]
          %v2131 = vld [vmem:[#allocation2 + $0xb0] sm:$0xff]
          %v2132 = vld [vmem:[#allocation2 + $0xb8] sm:$0xff]
          %v2133 = vld [vmem:[#allocation2 + $0xc0] sm:$0xff]
          %v2134 = vld [vmem:[#allocation2 + $0xc8] sm:$0xff]
          %v2135 = vld [vmem:[#allocation2 + $0xd0] sm:$0xff]
          %v2136 = vld [vmem:[#allocation2 + $0xd8] sm:$0xff]
          %v2137 = vld [vmem:[#allocation2 + $0xe0] sm:$0xff]
          %v2138 = vld [vmem:[#allocation2 + $0xe8] sm:$0xff]
          %v2139 = vld [vmem:[#allocation2 + $0xf0] sm:$0xff]
          %v2140 = vld [vmem:[#allocation2 + $0xf8] sm:$0xff]
          %v2141 = vld [vmem:[%s5] sm:$0x3]
          %v2143 = vlaneseq
          %v2144 = vshrl.u32 %v2143, 7
          %v2145 = vsub.s32 0, %v2144
          %v2146 = vrot.slane %v2141, %v2145
          %v2147 = vlaneseq
          %v2148 = vshrl.u32 %v2147, 7
          %v2149 = vsub.s32 1, %v2148
          %v2150 = vrot.slane %v2141, %v2149
          %v2153 = vadd.f32 %v2109, %v2146
          %v2154 = vadd.f32 %v2110, %v2150
          %v2155 = vadd.f32 %v2111, %v2146
          %v2156 = vadd.f32 %v2112, %v2150
          %v2157 = vadd.f32 %v2113, %v2146
          %v2158 = vadd.f32 %v2114, %v2150
          %v2159 = vadd.f32 %v2115, %v2146
          %v2160 = vadd.f32 %v2116, %v2150
          %v2161 = vadd.f32 %v2117, %v2146
          %v2162 = vadd.f32 %v2118, %v2150
          %v2163 = vadd.f32 %v2119, %v2146
          %v2164 = vadd.f32 %v2120, %v2150
          %v2165 = vadd.f32 %v2121, %v2146
          %v2166 = vadd.f32 %v2122, %v2150
          %v2167 = vadd.f32 %v2123, %v2146
          %v2168 = vadd.f32 %v2124, %v2150
          %v2169 = vadd.f32 %v2125, %v2146
          %v2170 = vadd.f32 %v2126, %v2150
          %v2171 = vadd.f32 %v2127, %v2146
          %v2172 = vadd.f32 %v2128, %v2150
          %v2173 = vadd.f32 %v2129, %v2146
          %v2174 = vadd.f32 %v2130, %v2150
          %v2175 = vadd.f32 %v2131, %v2146
          %v2176 = vadd.f32 %v2132, %v2150
          %v2177 = vadd.f32 %v2133, %v2146
          %v2178 = vadd.f32 %v2134, %v2150
          %v2179 = vadd.f32 %v2135, %v2146
          %v2180 = vadd.f32 %v2136, %v2150
          %v2181 = vadd.f32 %v2137, %v2146
          %v2182 = vadd.f32 %v2138, %v2150
          %v2183 = vadd.f32 %v2139, %v2146
          %v2184 = vadd.f32 %v2140, %v2150
          %2185 = vst [vmem:[%s368] sm:$0xff] %v2153
          %2186 = vst [vmem:[%s368 + $0x8] sm:$0xff] %v2154
          %2187 = vst [vmem:[%s368 + $0x10] sm:$0xff] %v2155
          %2188 = vst [vmem:[%s368 + $0x18] sm:$0xff] %v2156
          %2189 = vst [vmem:[%s368 + $0x20] sm:$0xff] %v2157
          %2190 = vst [vmem:[%s368 + $0x28] sm:$0xff] %v2158
          %2191 = vst [vmem:[%s368 + $0x30] sm:$0xff] %v2159
          %2192 = vst [vmem:[%s368 + $0x38] sm:$0xff] %v2160
          %2193 = vst [vmem:[%s368 + $0x40] sm:$0xff] %v2161
          %2194 = vst [vmem:[%s368 + $0x48] sm:$0xff] %v2162
          %2195 = vst [vmem:[%s368 + $0x50] sm:$0xff] %v2163
          %2196 = vst [vmem:[%s368 + $0x58] sm:$0xff] %v2164
          %2197 = vst [vmem:[%s368 + $0x60] sm:$0xff] %v2165
          %2198 = vst [vmem:[%s368 + $0x68] sm:$0xff] %v2166
          %2199 = vst [vmem:[%s368 + $0x70] sm:$0xff] %v2167
          %2200 = vst [vmem:[%s368 + $0x78] sm:$0xff] %v2168
          %2201 = vst [vmem:[%s368 + $0x80] sm:$0xff] %v2169
          %2202 = vst [vmem:[%s368 + $0x88] sm:$0xff] %v2170
          %2203 = vst [vmem:[%s368 + $0x90] sm:$0xff] %v2171
          %2204 = vst [vmem:[%s368 + $0x98] sm:$0xff] %v2172
          %2205 = vst [vmem:[%s368 + $0xa0] sm:$0xff] %v2173
          %2206 = vst [vmem:[%s368 + $0xa8] sm:$0xff] %v2174
          %2207 = vst [vmem:[%s368 + $0xb0] sm:$0xff] %v2175
          %2208 = vst [vmem:[%s368 + $0xb8] sm:$0xff] %v2176
          %2209 = vst [vmem:[%s368 + $0xc0] sm:$0xff] %v2177
          %2210 = vst [vmem:[%s368 + $0xc8] sm:$0xff] %v2178
          %2211 = vst [vmem:[%s368 + $0xd0] sm:$0xff] %v2179
          %2212 = vst [vmem:[%s368 + $0xd8] sm:$0xff] %v2180
          %2213 = vst [vmem:[%s368 + $0xe0] sm:$0xff] %v2181
          %2214 = vst [vmem:[%s368 + $0xe8] sm:$0xff] %v2182
          %2215 = vst [vmem:[%s368 + $0xf0] sm:$0xff] %v2183
          %2216 = vst [vmem:[%s368 + $0xf8] sm:$0xff] %v2184
        $region60: #{jumprelu_sae_forward.1} parent=43 // pred_fallthru
          _
        %s2217 = sand.u32 %s197, 1
        %s2218 = scalar_lea.sflag [#allocation5], %s2217
        %s2219 = sand.u32 %s197, 1
        %s2220 = smul.addr %s2219, 256
        %s2221 = scalar_lea.vmem [#allocation8], %s2220
        // Predicated region
        $region61: #{jumprelu_sae_forward.1} parent=43 // pred_check
          %p2222 = pneg %p207
        $region62: #{jumprelu_sae_forward.1} parent=43 // pred_check_branch
          %2224 = sbr.rel (%p2222) target = $region64
        $region63: #{jumprelu_sae_forward.1} parent=43 // pred_region
          %s2225 = smul.u32 16, %s30
          %s2227 = ssub.s32 4096, 4096
          %2228 = vsyncadd %s2218, %s2227
          %s2229 = smul.addr %s2225, 2
          %s2230 = smul.addr %s2229, 128
          %s2231 = scalar_lea.hbm %s6, %s2230
          %s2232 = sshll.u32 %s2221, 4
          %s2233 = int_to_ptr.vmem [resolvable:$true] %s2232
          %2238 = dma.vmem_to_hbm [thread:$0]  %s2233, 4096, %s2231, %s2218, 256, 256, 16
        $region64: #{jumprelu_sae_forward.1} parent=43 // pred_fallthru
          _
      $region44: #{jumprelu_sae_forward.1} parent=5 // pred_fallthru
        _
      %p2239 = scmp.le.s32.totalorder 2, %s21
      // Predicated region
      $region65: #{jumprelu_sae_forward.1} parent=5 // pred_check
        %p2240 = pneg %p2239
      $region66: #{jumprelu_sae_forward.1} parent=5 // pred_check_branch
        %2242 = sbr.rel (%p2240) target = $region68
      $region67: #{jumprelu_sae_forward.1} parent=5 // pred_region
        %s2243 = ssub.s32 %s21, 2
        // Predicated region
        $region69: #{jumprelu_sae_forward.1} parent=67 // pred_check
          %p2244 = pneg %p213
        $region70: #{jumprelu_sae_forward.1} parent=67 // pred_check_branch
          %2246 = sbr.rel (%p2244) target = $region72
        $region71: #{jumprelu_sae_forward.1} parent=67 // pred_region
          %s2247 = sand.u32 %s198, 1
          %s2248 = scalar_lea.sflag [#allocation5], %s2247
          %s2249 = sand.u32 %s198, 1
          %s2250 = smul.addr %s2249, 256
          %s2251 = scalar_lea.vmem [#allocation8], %s2250
          %2252 = dma.done %s2248, 4096
        $region72: #{jumprelu_sae_forward.1} parent=67 // pred_fallthru
          _
      $region68: #{jumprelu_sae_forward.1} parent=5 // pred_fallthru
        _
    $region6: #{jumprelu_sae_forward.1} parent=1 // loop_footer
      %s25 = sadd.s32 1, %s21
    $region7: #{jumprelu_sae_forward.1} parent=1 // loop_footer_branch
      %20 = sbr.rel target = $region3
    $region8: #{jumprelu_sae_forward.1} parent=1 // loop_exit
      _
    %2253 = vsyncpa [#allocation4], 1
    %s2254 = scalar_lea.sflag [#allocation4], 1
    %2255 = vsyncpa %s2254, 1
    %2256 = vsyncpa [#allocation7], 1
    %s2257 = scalar_lea.sflag [#allocation7], 1
    %2258 = vsyncpa %s2257, 1
    %2259 = vsyncpa [#allocation5], 1
    %s2260 = scalar_lea.sflag [#allocation5], 1
    %2261 = vsyncpa %s2260, 1

</llo_original>
